<compile_context>
chip_gen: v6e
topology: v6e:2x2x1
jax: 0.10.0
libtpu: 0.0.40
codegen_flags: <defaults>
</compile_context>

<pallas_src>
import numpy as np
import jax
import jax.numpy as jnp
from jax import lax
from jax.experimental import pallas as pl
from jax.experimental.pallas import tpu as pltpu

D_MODEL = 32
N_HEADS = 4
D_HEAD = D_MODEL // N_HEADS
D_FF = 64
SEQ = 8
BATCH = 2
BS = BATCH * SEQ
LN_EPS = 1e-5  # torch.nn.LayerNorm default eps

# ---- packed weight-slab layout: every section starts on a 128-lane boundary ----
_QKV_OFF = 0                        # (D_MODEL, 3*D_MODEL), attn scale folded into Q cols
_WO_OFF = 128                       # (D_MODEL, D_MODEL)
_W1_OFF = 256                       # (D_MODEL, D_FF)
_W2_OFF = 384                       # (D_FF,   D_MODEL)
_WSLAB_ROWS = D_FF                  # 64
_WSLAB_COLS = _W2_OFF + D_MODEL     # 416

# ---- bias / LN / mask slab ----
_VSLAB_COLS = 128
_MASK_ROW = 8                       # rows 8..8+BS-1 hold the block-diagonal mask
_VSLAB_ROWS = _MASK_ROW + BS        # 24


def encoder_block_kernel(x_ref, w_ref, vec_ref, o_ref):
    x = x_ref[...]                                                   # (BS, D) f32

    # ---- packed parameter views (static windows of the VMEM refs) ----
    wqkv = w_ref[0:D_MODEL, _QKV_OFF:_QKV_OFF + 3 * D_MODEL]         # (D, 3D)
    wo = w_ref[0:D_MODEL, _WO_OFF:_WO_OFF + D_MODEL]                 # (D, D)
    w1 = w_ref[0:D_MODEL, _W1_OFF:_W1_OFF + D_FF]                    # (D, D_FF)
    w2 = w_ref[0:D_FF, _W2_OFF:_W2_OFF + D_MODEL]                    # (D_FF, D)

    bqkv = vec_ref[0:1, 0:3 * D_MODEL]                               # (1, 3D)
    bo = vec_ref[1:2, 0:D_MODEL]
    b1 = vec_ref[2:3, 0:D_FF]
    b2 = vec_ref[3:4, 0:D_MODEL]
    g1 = vec_ref[4:5, 0:D_MODEL]
    be1 = vec_ref[5:6, 0:D_MODEL]
    g2 = vec_ref[6:7, 0:D_MODEL]
    be2 = vec_ref[7:8, 0:D_MODEL]
    # block-diagonal additive mask (0 in-batch, -1e30 cross-batch), packed as
    # constant data -> no runtime iota/floor/compare ops.
    neg_mask = vec_ref[_MASK_ROW:_MASK_ROW + BS, 0:BS]               # (BS, BS)

    # ---- LayerNorm 1 ----
    mu = jnp.mean(x, axis=-1, keepdims=True)
    var = jnp.mean((x - mu) ** 2, axis=-1, keepdims=True)
    xn = (x - mu) * lax.rsqrt(var + LN_EPS) * g1 + be1

    # ---- fused Q/K/V projection (1/sqrt(d_head) pre-folded into Q columns) ----
    qkv = jnp.dot(xn, wqkv, preferred_element_type=jnp.float32) + bqkv   # (BS, 3D)

    # one transpose of the K section; per-head K slices become sublane slices
    kT = qkv[:, D_MODEL:2 * D_MODEL].T                                # (D, BS)

    # ---- multi-head attention; output projection accumulated per head ----
    att = jnp.zeros((BS, D_MODEL), jnp.float32)
    for n in range(N_HEADS):                                          # static unroll
        lo = n * D_HEAD
        qh = qkv[:, lo:lo + D_HEAD]                                   # (BS, h), pre-scaled
        kTh = kT[lo:lo + D_HEAD, :]                                   # (h, BS) sublane slice
        vh = qkv[:, 2 * D_MODEL + lo:2 * D_MODEL + lo + D_HEAD]       # (BS, h)
        s = jnp.dot(qh, kTh, preferred_element_type=jnp.float32) + neg_mask   # (BS, BS)
        s = s - jnp.max(s, axis=-1, keepdims=True)
        p = jnp.exp(s)
        denom = jnp.sum(p, axis=-1, keepdims=True)
        inv = pl.reciprocal(denom, approx=True)                       # EUP slot
        inv = inv * (2.0 - denom * inv)                               # one Newton step
        ctx = jnp.dot(p * inv, vh, preferred_element_type=jnp.float32)        # (BS, h)
        att = att + jnp.dot(ctx, wo[lo:lo + D_HEAD, :],
                            preferred_element_type=jnp.float32)               # (BS, D)

    y1 = x + att + bo                                                 # residual 1

    # ---- LayerNorm 2 ----
    mu2 = jnp.mean(y1, axis=-1, keepdims=True)
    var2 = jnp.mean((y1 - mu2) ** 2, axis=-1, keepdims=True)
    y1n = (y1 - mu2) * lax.rsqrt(var2 + LN_EPS) * g2 + be2

    # ---- FeedForward (dropout is identity in eval mode) ----
    hdn = jnp.maximum(jnp.dot(y1n, w1, preferred_element_type=jnp.float32) + b1, 0.0)
    ff = jnp.dot(hdn, w2, preferred_element_type=jnp.float32) + b2

    # (BS, 32) full-block store; lane-dense repacking only pays once BS grows.
    o_ref[...] = y1 + ff                                              # residual 2


def pack_params(params):
    """Pack the 16 canonical parameters (host-side, once) into 2 slabs."""
    params = [np.asarray(p, np.float32) for p in params]
    (wq, wk, wv, wo, bq, bk, bv, bo,
     g1, be1, g2, be2, w1, b1, w2, b2) = params

    scale = np.float32(1.0 / np.sqrt(np.float32(D_HEAD)))
    wqkv = np.concatenate([wq * scale, wk, wv], axis=1)               # (D, 3D)
    bqkv = np.concatenate([bq * scale, bk, bv], axis=1)               # (1, 3D)

    w_slab = np.zeros((_WSLAB_ROWS, _WSLAB_COLS), np.float32)
    w_slab[:D_MODEL, _QKV_OFF:_QKV_OFF + 3 * D_MODEL] = wqkv
    w_slab[:D_MODEL, _WO_OFF:_WO_OFF + D_MODEL] = wo
    w_slab[:D_MODEL, _W1_OFF:_W1_OFF + D_FF] = w1
    w_slab[:D_FF, _W2_OFF:_W2_OFF + D_MODEL] = w2

    vec_slab = np.zeros((_VSLAB_ROWS, _VSLAB_COLS), np.float32)

    def put(r, v):
        v = np.asarray(v, np.float32).reshape(-1)
        vec_slab[r, :v.shape[0]] = v

    put(0, bqkv); put(1, bo); put(2, b1); put(3, b2)
    put(4, g1); put(5, be1); put(6, g2); put(7, be2)

    # block-diagonal additive mask, built at pack time (BS is static)
    row_batch = np.arange(BS) // SEQ
    mask = np.where(row_batch[:, None] == row_batch[None, :], 0.0, -1e30)
    vec_slab[_MASK_ROW:_MASK_ROW + BS, 0:BS] = mask.astype(np.float32)

    return jnp.asarray(w_slab), jnp.asarray(vec_slab)


def make_encoder_block(params):
    """Pack once; return a jitted forward fn that closes over the packed slabs."""
    w_slab, vec_slab = pack_params(params)

    @jax.jit
    def fwd(x):
        B, S, D = x.shape
        assert B == BATCH and S == SEQ and D == D_MODEL
        x2d = x.reshape(B * S, D)
        out2d = pl.pallas_call(
            encoder_block_kernel,
            out_shape=jax.ShapeDtypeStruct((B * S, D), jnp.float32),
            in_specs=[pl.BlockSpec(memory_space=pltpu.MemorySpace.VMEM),
                      pl.BlockSpec(memory_space=pltpu.MemorySpace.VMEM),
                      pl.BlockSpec(memory_space=pltpu.MemorySpace.VMEM)],
            out_specs=pl.BlockSpec(memory_space=pltpu.MemorySpace.VMEM),
        )(x2d, w_slab, vec_slab)
        return out2d.reshape(B, S, D)

    return fwd


def xavier_uniform(key, fan_in, fan_out):
    bound = float(np.sqrt(6.0 / (fan_in + fan_out)))
    # stored as (in, out): torch Linear weight (out, in), transposed
    return jax.random.uniform(key, (fan_in, fan_out), jnp.float32, -bound, bound)


def make_params(key):
    ks = jax.random.split(key, 16)
    wq = xavier_uniform(ks[0], D_MODEL, D_MODEL)
    wk = xavier_uniform(ks[1], D_MODEL, D_MODEL)
    wv = xavier_uniform(ks[2], D_MODEL, D_MODEL)
    wo = xavier_uniform(ks[3], D_MODEL, D_MODEL)
    w1 = xavier_uniform(ks[4], D_MODEL, D_FF)
    w2 = xavier_uniform(ks[5], D_FF, D_MODEL)

    # torch's init zeroes biases / sets LN to (1,0); use small random values so
    # every parameter path in the kernel is actually exercised by the check.
    def vec(k, n, scale=0.1):
        return scale * jax.random.normal(k, (1, n), jnp.float32)

    bq, bk, bv, bo = vec(ks[6], D_MODEL), vec(ks[7], D_MODEL), vec(ks[8], D_MODEL), vec(ks[9], D_MODEL)
    g1 = 1.0 + vec(ks[10], D_MODEL)
    be1 = vec(ks[11], D_MODEL)
    g2 = 1.0 + vec(ks[12], D_MODEL)
    be2 = vec(ks[13], D_MODEL)
    b1 = vec(ks[14], D_FF)
    b2 = vec(ks[15], D_MODEL)
    # order: wq wk wv wo | bq bk bv bo | g1 be1 g2 be2 | w1 b1 w2 b2
    return (wq, wk, wv, wo, bq, bk, bv, bo, g1, be1, g2, be2, w1, b1, w2, b2)


def reference(x, params):
    (wq, wk, wv, wo, bq, bk, bv, bo,
     g1, be1, g2, be2, w1, b1, w2, b2) = params

    def ln(z, g, b):
        mu = z.mean(-1, keepdims=True)
        var = ((z - mu) ** 2).mean(-1, keepdims=True)
        return (z - mu) / jnp.sqrt(var + LN_EPS) * g[0] + b[0]

    B, S, D = x.shape
    xn = ln(x, g1, be1)
    q = xn @ wq + bq[0]
    k = xn @ wk + bk[0]
    v = xn @ wv + bv[0]
    q = q.reshape(B, S, N_HEADS, D_HEAD).transpose(0, 2, 1, 3)
    k = k.reshape(B, S, N_HEADS, D_HEAD).transpose(0, 2, 1, 3)
    v = v.reshape(B, S, N_HEADS, D_HEAD).transpose(0, 2, 1, 3)
    s = jnp.einsum('bnqh,bnkh->bnqk', q, k) / jnp.sqrt(jnp.float32(D_HEAD))
    p = jax.nn.softmax(s, axis=-1)
    o = jnp.einsum('bnqk,bnkh->bnqh', p, v).transpose(0, 2, 1, 3).reshape(B, S, D)
    y1 = x + (o @ wo + bo[0])
    y1n = ln(y1, g2, be2)
    ff = jnp.maximum(y1n @ w1 + b1[0], 0.0) @ w2 + b2[0]
    return y1 + ff


if __name__ == "__main__":
    key = jax.random.PRNGKey(0)
    kx, kp = jax.random.split(key)
    x = jax.random.normal(kx, (BATCH, SEQ, D_MODEL), jnp.float32)
    params = make_params(kp)

    fwd = make_encoder_block(params)          # packing happens once, here
    out = jax.block_until_ready(fwd(x))
    ref = reference(x, params)

    assert out.shape == (BATCH, SEQ, D_MODEL)
    err = jnp.max(jnp.abs(out - ref))
    assert jnp.allclose(out, ref, rtol=1e-4, atol=1e-4), f"max err {err}"

    print("KERNEL_OK")
</pallas_src>

<mosaic_0001>
module attributes {stable_mosaic.version = 11 : i64} {
  func.func @encoder_block_kernel(%arg0: memref<16x32xf32, #tpu.memory_space<vmem>>, %arg1: memref<64x416xf32, #tpu.memory_space<vmem>>, %arg2: memref<24x128xf32, #tpu.memory_space<vmem>>, %arg3: memref<16x32xf32, #tpu.memory_space<vmem>>) attributes {dimension_semantics = [], scalar_prefetch = 0 : i64, scratch_operands = 0 : i64, tpu.core_type = #tpu.core_type<tc>} {
    %c0 = arith.constant 0 : index
    %c0_0 = arith.constant 0 : index
    %0 = vector.load %arg0[%c0, %c0_0] : memref<16x32xf32, #tpu.memory_space<vmem>>, vector<16x32xf32>
    %c0_1 = arith.constant 0 : index
    %c0_2 = arith.constant 0 : index
    %1 = vector.load %arg1[%c0_1, %c0_2] : memref<64x416xf32, #tpu.memory_space<vmem>>, vector<32x96xf32>
    %c0_3 = arith.constant 0 : index
    %c128 = arith.constant 128 : index
    %2 = vector.load %arg1[%c0_3, %c128] : memref<64x416xf32, #tpu.memory_space<vmem>>, vector<32x32xf32>
    %c0_4 = arith.constant 0 : index
    %c256 = arith.constant 256 : index
    %3 = vector.load %arg1[%c0_4, %c256] : memref<64x416xf32, #tpu.memory_space<vmem>>, vector<32x64xf32>
    %c0_5 = arith.constant 0 : index
    %c384 = arith.constant 384 : index
    %4 = vector.load %arg1[%c0_5, %c384] : memref<64x416xf32, #tpu.memory_space<vmem>>, vector<64x32xf32>
    %c0_6 = arith.constant 0 : index
    %c0_7 = arith.constant 0 : index
    %5 = vector.load %arg2[%c0_6, %c0_7] : memref<24x128xf32, #tpu.memory_space<vmem>>, vector<1x96xf32>
    %c1 = arith.constant 1 : index
    %c0_8 = arith.constant 0 : index
    %6 = vector.load %arg2[%c1, %c0_8] : memref<24x128xf32, #tpu.memory_space<vmem>>, vector<1x32xf32>
    %c2 = arith.constant 2 : index
    %c0_9 = arith.constant 0 : index
    %7 = vector.load %arg2[%c2, %c0_9] : memref<24x128xf32, #tpu.memory_space<vmem>>, vector<1x64xf32>
    %c3 = arith.constant 3 : index
    %c0_10 = arith.constant 0 : index
    %8 = vector.load %arg2[%c3, %c0_10] : memref<24x128xf32, #tpu.memory_space<vmem>>, vector<1x32xf32>
    %c4 = arith.constant 4 : index
    %c0_11 = arith.constant 0 : index
    %9 = vector.load %arg2[%c4, %c0_11] : memref<24x128xf32, #tpu.memory_space<vmem>>, vector<1x32xf32>
    %c5 = arith.constant 5 : index
    %c0_12 = arith.constant 0 : index
    %10 = vector.load %arg2[%c5, %c0_12] : memref<24x128xf32, #tpu.memory_space<vmem>>, vector<1x32xf32>
    %c6 = arith.constant 6 : index
    %c0_13 = arith.constant 0 : index
    %11 = vector.load %arg2[%c6, %c0_13] : memref<24x128xf32, #tpu.memory_space<vmem>>, vector<1x32xf32>
    %c7 = arith.constant 7 : index
    %c0_14 = arith.constant 0 : index
    %12 = vector.load %arg2[%c7, %c0_14] : memref<24x128xf32, #tpu.memory_space<vmem>>, vector<1x32xf32>
    %c8 = arith.constant 8 : index
    %c0_15 = arith.constant 0 : index
    %13 = vector.load %arg2[%c8, %c0_15] : memref<24x128xf32, #tpu.memory_space<vmem>>, vector<16x16xf32>
    %cst = arith.constant dense<0.000000e+00> : vector<16xf32>
    %14 = vector.multi_reduction <add>, %0, %cst [1] : vector<16x32xf32> to vector<16xf32>
    %15 = vector.shape_cast %14 : vector<16xf32> to vector<16x1xf32>
    %cst_16 = arith.constant 3.200000e+01 : f32
    %16 = vector.broadcast %cst_16 : f32 to vector<16x1xf32>
    %17 = arith.divf %15, %16 : vector<16x1xf32>
    %18 = vector.broadcast %17 : vector<16x1xf32> to vector<16x32xf32>
    %19 = arith.subf %0, %18 : vector<16x32xf32>
    %20 = arith.mulf %19, %19 : vector<16x32xf32>
    %cst_17 = arith.constant dense<0.000000e+00> : vector<16xf32>
    %21 = vector.multi_reduction <add>, %20, %cst_17 [1] : vector<16x32xf32> to vector<16xf32>
    %22 = vector.shape_cast %21 : vector<16xf32> to vector<16x1xf32>
    %cst_18 = arith.constant 3.200000e+01 : f32
    %23 = vector.broadcast %cst_18 : f32 to vector<16x1xf32>
    %24 = arith.divf %22, %23 : vector<16x1xf32>
    %25 = vector.broadcast %17 : vector<16x1xf32> to vector<16x32xf32>
    %26 = arith.subf %0, %25 : vector<16x32xf32>
    %cst_19 = arith.constant 9.99999974E-6 : f32
    %27 = vector.broadcast %cst_19 : f32 to vector<16x1xf32>
    %28 = arith.addf %24, %27 : vector<16x1xf32>
    %29 = math.rsqrt %28 : vector<16x1xf32>
    %30 = vector.broadcast %29 : vector<16x1xf32> to vector<16x32xf32>
    %31 = arith.mulf %26, %30 : vector<16x32xf32>
    %32 = vector.broadcast %9 : vector<1x32xf32> to vector<16x32xf32>
    %33 = arith.mulf %31, %32 : vector<16x32xf32>
    %34 = vector.broadcast %10 : vector<1x32xf32> to vector<16x32xf32>
    %35 = arith.addf %33, %34 : vector<16x32xf32>
    %cst_20 = arith.constant dense<0.000000e+00> : vector<16x96xf32>
    %36 = tpu.matmul %35, %1, %cst_20 {dimension_numbers = #tpu.dot_dimension_numbers<[1], [0], [0], [1], [0, 0, 1, 1], [], []>} : vector<16x32xf32>, vector<32x96xf32>, vector<16x96xf32> -> vector<16x96xf32>
    %37 = vector.broadcast %5 : vector<1x96xf32> to vector<16x96xf32>
    %38 = arith.addf %36, %37 : vector<16x96xf32>
    %39 = vector.extract_strided_slice %38 {offsets = [0, 32], sizes = [16, 32], strides = [1, 1]} : vector<16x96xf32> to vector<16x32xf32>
    %40 = tpu.transpose %39, [1, 0] : vector<16x32xf32> -> vector<32x16xf32>
    %cst_21 = arith.constant 0.000000e+00 : f32
    %41 = vector.broadcast %cst_21 : f32 to vector<16x32xf32>
    %42 = vector.extract_strided_slice %38 {offsets = [0, 0], sizes = [16, 8], strides = [1, 1]} : vector<16x96xf32> to vector<16x8xf32>
    %43 = vector.extract_strided_slice %40 {offsets = [0, 0], sizes = [8, 16], strides = [1, 1]} : vector<32x16xf32> to vector<8x16xf32>
    %44 = vector.extract_strided_slice %38 {offsets = [0, 64], sizes = [16, 8], strides = [1, 1]} : vector<16x96xf32> to vector<16x8xf32>
    %cst_22 = arith.constant dense<0.000000e+00> : vector<16x16xf32>
    %45 = tpu.matmul %42, %43, %cst_22 {dimension_numbers = #tpu.dot_dimension_numbers<[1], [0], [0], [1], [0, 0, 1, 1], [], []>} : vector<16x8xf32>, vector<8x16xf32>, vector<16x16xf32> -> vector<16x16xf32>
    %46 = arith.addf %45, %13 : vector<16x16xf32>
    %cst_23 = arith.constant dense<0xFF800000> : vector<16xf32>
    %47 = vector.multi_reduction <maximumf>, %46, %cst_23 [1] : vector<16x16xf32> to vector<16xf32>
    %48 = vector.shape_cast %47 : vector<16xf32> to vector<16x1xf32>
    %49 = vector.broadcast %48 : vector<16x1xf32> to vector<16x16xf32>
    %50 = arith.subf %46, %49 : vector<16x16xf32>
    %51 = math.exp %50 : vector<16x16xf32>
    %cst_24 = arith.constant dense<0.000000e+00> : vector<16xf32>
    %52 = vector.multi_reduction <add>, %51, %cst_24 [1] : vector<16x16xf32> to vector<16xf32>
    %53 = vector.shape_cast %52 : vector<16xf32> to vector<16x1xf32>
    %54 = tpu.reciprocal %53 {approx = true} : vector<16x1xf32> -> vector<16x1xf32>
    %55 = arith.mulf %53, %54 : vector<16x1xf32>
    %cst_25 = arith.constant 2.000000e+00 : f32
    %56 = vector.broadcast %cst_25 : f32 to vector<16x1xf32>
    %57 = arith.subf %56, %55 : vector<16x1xf32>
    %58 = arith.mulf %54, %57 : vector<16x1xf32>
    %59 = vector.broadcast %58 : vector<16x1xf32> to vector<16x16xf32>
    %60 = arith.mulf %51, %59 : vector<16x16xf32>
    %cst_26 = arith.constant dense<0.000000e+00> : vector<16x8xf32>
    %61 = tpu.matmul %60, %44, %cst_26 {dimension_numbers = #tpu.dot_dimension_numbers<[1], [0], [0], [1], [0, 0, 1, 1], [], []>} : vector<16x16xf32>, vector<16x8xf32>, vector<16x8xf32> -> vector<16x8xf32>
    %62 = vector.extract_strided_slice %2 {offsets = [0, 0], sizes = [8, 32], strides = [1, 1]} : vector<32x32xf32> to vector<8x32xf32>
    %cst_27 = arith.constant dense<0.000000e+00> : vector<16x32xf32>
    %63 = tpu.matmul %61, %62, %cst_27 {dimension_numbers = #tpu.dot_dimension_numbers<[1], [0], [0], [1], [0, 0, 1, 1], [], []>} : vector<16x8xf32>, vector<8x32xf32>, vector<16x32xf32> -> vector<16x32xf32>
    %64 = arith.addf %41, %63 : vector<16x32xf32>
    %65 = vector.extract_strided_slice %38 {offsets = [0, 8], sizes = [16, 8], strides = [1, 1]} : vector<16x96xf32> to vector<16x8xf32>
    %66 = vector.extract_strided_slice %40 {offsets = [8, 0], sizes = [8, 16], strides = [1, 1]} : vector<32x16xf32> to vector<8x16xf32>
    %67 = vector.extract_strided_slice %38 {offsets = [0, 72], sizes = [16, 8], strides = [1, 1]} : vector<16x96xf32> to vector<16x8xf32>
    %cst_28 = arith.constant dense<0.000000e+00> : vector<16x16xf32>
    %68 = tpu.matmul %65, %66, %cst_28 {dimension_numbers = #tpu.dot_dimension_numbers<[1], [0], [0], [1], [0, 0, 1, 1], [], []>} : vector<16x8xf32>, vector<8x16xf32>, vector<16x16xf32> -> vector<16x16xf32>
    %69 = arith.addf %68, %13 : vector<16x16xf32>
    %cst_29 = arith.constant dense<0xFF800000> : vector<16xf32>
    %70 = vector.multi_reduction <maximumf>, %69, %cst_29 [1] : vector<16x16xf32> to vector<16xf32>
    %71 = vector.shape_cast %70 : vector<16xf32> to vector<16x1xf32>
    %72 = vector.broadcast %71 : vector<16x1xf32> to vector<16x16xf32>
    %73 = arith.subf %69, %72 : vector<16x16xf32>
    %74 = math.exp %73 : vector<16x16xf32>
    %cst_30 = arith.constant dense<0.000000e+00> : vector<16xf32>
    %75 = vector.multi_reduction <add>, %74, %cst_30 [1] : vector<16x16xf32> to vector<16xf32>
    %76 = vector.shape_cast %75 : vector<16xf32> to vector<16x1xf32>
    %77 = tpu.reciprocal %76 {approx = true} : vector<16x1xf32> -> vector<16x1xf32>
    %78 = arith.mulf %76, %77 : vector<16x1xf32>
    %cst_31 = arith.constant 2.000000e+00 : f32
    %79 = vector.broadcast %cst_31 : f32 to vector<16x1xf32>
    %80 = arith.subf %79, %78 : vector<16x1xf32>
    %81 = arith.mulf %77, %80 : vector<16x1xf32>
    %82 = vector.broadcast %81 : vector<16x1xf32> to vector<16x16xf32>
    %83 = arith.mulf %74, %82 : vector<16x16xf32>
    %cst_32 = arith.constant dense<0.000000e+00> : vector<16x8xf32>
    %84 = tpu.matmul %83, %67, %cst_32 {dimension_numbers = #tpu.dot_dimension_numbers<[1], [0], [0], [1], [0, 0, 1, 1], [], []>} : vector<16x16xf32>, vector<16x8xf32>, vector<16x8xf32> -> vector<16x8xf32>
    %85 = vector.extract_strided_slice %2 {offsets = [8, 0], sizes = [8, 32], strides = [1, 1]} : vector<32x32xf32> to vector<8x32xf32>
    %cst_33 = arith.constant dense<0.000000e+00> : vector<16x32xf32>
    %86 = tpu.matmul %84, %85, %cst_33 {dimension_numbers = #tpu.dot_dimension_numbers<[1], [0], [0], [1], [0, 0, 1, 1], [], []>} : vector<16x8xf32>, vector<8x32xf32>, vector<16x32xf32> -> vector<16x32xf32>
    %87 = arith.addf %64, %86 : vector<16x32xf32>
    %88 = vector.extract_strided_slice %38 {offsets = [0, 16], sizes = [16, 8], strides = [1, 1]} : vector<16x96xf32> to vector<16x8xf32>
    %89 = vector.extract_strided_slice %40 {offsets = [16, 0], sizes = [8, 16], strides = [1, 1]} : vector<32x16xf32> to vector<8x16xf32>
    %90 = vector.extract_strided_slice %38 {offsets = [0, 80], sizes = [16, 8], strides = [1, 1]} : vector<16x96xf32> to vector<16x8xf32>
    %cst_34 = arith.constant dense<0.000000e+00> : vector<16x16xf32>
    %91 = tpu.matmul %88, %89, %cst_34 {dimension_numbers = #tpu.dot_dimension_numbers<[1], [0], [0], [1], [0, 0, 1, 1], [], []>} : vector<16x8xf32>, vector<8x16xf32>, vector<16x16xf32> -> vector<16x16xf32>
    %92 = arith.addf %91, %13 : vector<16x16xf32>
    %cst_35 = arith.constant dense<0xFF800000> : vector<16xf32>
    %93 = vector.multi_reduction <maximumf>, %92, %cst_35 [1] : vector<16x16xf32> to vector<16xf32>
    %94 = vector.shape_cast %93 : vector<16xf32> to vector<16x1xf32>
    %95 = vector.broadcast %94 : vector<16x1xf32> to vector<16x16xf32>
    %96 = arith.subf %92, %95 : vector<16x16xf32>
    %97 = math.exp %96 : vector<16x16xf32>
    %cst_36 = arith.constant dense<0.000000e+00> : vector<16xf32>
    %98 = vector.multi_reduction <add>, %97, %cst_36 [1] : vector<16x16xf32> to vector<16xf32>
    %99 = vector.shape_cast %98 : vector<16xf32> to vector<16x1xf32>
    %100 = tpu.reciprocal %99 {approx = true} : vector<16x1xf32> -> vector<16x1xf32>
    %101 = arith.mulf %99, %100 : vector<16x1xf32>
    %cst_37 = arith.constant 2.000000e+00 : f32
    %102 = vector.broadcast %cst_37 : f32 to vector<16x1xf32>
    %103 = arith.subf %102, %101 : vector<16x1xf32>
    %104 = arith.mulf %100, %103 : vector<16x1xf32>
    %105 = vector.broadcast %104 : vector<16x1xf32> to vector<16x16xf32>
    %106 = arith.mulf %97, %105 : vector<16x16xf32>
    %cst_38 = arith.constant dense<0.000000e+00> : vector<16x8xf32>
    %107 = tpu.matmul %106, %90, %cst_38 {dimension_numbers = #tpu.dot_dimension_numbers<[1], [0], [0], [1], [0, 0, 1, 1], [], []>} : vector<16x16xf32>, vector<16x8xf32>, vector<16x8xf32> -> vector<16x8xf32>
    %108 = vector.extract_strided_slice %2 {offsets = [16, 0], sizes = [8, 32], strides = [1, 1]} : vector<32x32xf32> to vector<8x32xf32>
    %cst_39 = arith.constant dense<0.000000e+00> : vector<16x32xf32>
    %109 = tpu.matmul %107, %108, %cst_39 {dimension_numbers = #tpu.dot_dimension_numbers<[1], [0], [0], [1], [0, 0, 1, 1], [], []>} : vector<16x8xf32>, vector<8x32xf32>, vector<16x32xf32> -> vector<16x32xf32>
    %110 = arith.addf %87, %109 : vector<16x32xf32>
    %111 = vector.extract_strided_slice %38 {offsets = [0, 24], sizes = [16, 8], strides = [1, 1]} : vector<16x96xf32> to vector<16x8xf32>
    %112 = vector.extract_strided_slice %40 {offsets = [24, 0], sizes = [8, 16], strides = [1, 1]} : vector<32x16xf32> to vector<8x16xf32>
    %113 = vector.extract_strided_slice %38 {offsets = [0, 88], sizes = [16, 8], strides = [1, 1]} : vector<16x96xf32> to vector<16x8xf32>
    %cst_40 = arith.constant dense<0.000000e+00> : vector<16x16xf32>
    %114 = tpu.matmul %111, %112, %cst_40 {dimension_numbers = #tpu.dot_dimension_numbers<[1], [0], [0], [1], [0, 0, 1, 1], [], []>} : vector<16x8xf32>, vector<8x16xf32>, vector<16x16xf32> -> vector<16x16xf32>
    %115 = arith.addf %114, %13 : vector<16x16xf32>
    %cst_41 = arith.constant dense<0xFF800000> : vector<16xf32>
    %116 = vector.multi_reduction <maximumf>, %115, %cst_41 [1] : vector<16x16xf32> to vector<16xf32>
    %117 = vector.shape_cast %116 : vector<16xf32> to vector<16x1xf32>
    %118 = vector.broadcast %117 : vector<16x1xf32> to vector<16x16xf32>
    %119 = arith.subf %115, %118 : vector<16x16xf32>
    %120 = math.exp %119 : vector<16x16xf32>
    %cst_42 = arith.constant dense<0.000000e+00> : vector<16xf32>
    %121 = vector.multi_reduction <add>, %120, %cst_42 [1] : vector<16x16xf32> to vector<16xf32>
    %122 = vector.shape_cast %121 : vector<16xf32> to vector<16x1xf32>
    %123 = tpu.reciprocal %122 {approx = true} : vector<16x1xf32> -> vector<16x1xf32>
    %124 = arith.mulf %122, %123 : vector<16x1xf32>
    %cst_43 = arith.constant 2.000000e+00 : f32
    %125 = vector.broadcast %cst_43 : f32 to vector<16x1xf32>
    %126 = arith.subf %125, %124 : vector<16x1xf32>
    %127 = arith.mulf %123, %126 : vector<16x1xf32>
    %128 = vector.broadcast %127 : vector<16x1xf32> to vector<16x16xf32>
    %129 = arith.mulf %120, %128 : vector<16x16xf32>
    %cst_44 = arith.constant dense<0.000000e+00> : vector<16x8xf32>
    %130 = tpu.matmul %129, %113, %cst_44 {dimension_numbers = #tpu.dot_dimension_numbers<[1], [0], [0], [1], [0, 0, 1, 1], [], []>} : vector<16x16xf32>, vector<16x8xf32>, vector<16x8xf32> -> vector<16x8xf32>
    %131 = vector.extract_strided_slice %2 {offsets = [24, 0], sizes = [8, 32], strides = [1, 1]} : vector<32x32xf32> to vector<8x32xf32>
    %cst_45 = arith.constant dense<0.000000e+00> : vector<16x32xf32>
    %132 = tpu.matmul %130, %131, %cst_45 {dimension_numbers = #tpu.dot_dimension_numbers<[1], [0], [0], [1], [0, 0, 1, 1], [], []>} : vector<16x8xf32>, vector<8x32xf32>, vector<16x32xf32> -> vector<16x32xf32>
    %133 = arith.addf %110, %132 : vector<16x32xf32>
    %134 = arith.addf %0, %133 : vector<16x32xf32>
    %135 = vector.broadcast %6 : vector<1x32xf32> to vector<16x32xf32>
    %136 = arith.addf %134, %135 : vector<16x32xf32>
    %cst_46 = arith.constant dense<0.000000e+00> : vector<16xf32>
    %137 = vector.multi_reduction <add>, %136, %cst_46 [1] : vector<16x32xf32> to vector<16xf32>
    %138 = vector.shape_cast %137 : vector<16xf32> to vector<16x1xf32>
    %cst_47 = arith.constant 3.200000e+01 : f32
    %139 = vector.broadcast %cst_47 : f32 to vector<16x1xf32>
    %140 = arith.divf %138, %139 : vector<16x1xf32>
    %141 = vector.broadcast %140 : vector<16x1xf32> to vector<16x32xf32>
    %142 = arith.subf %136, %141 : vector<16x32xf32>
    %143 = arith.mulf %142, %142 : vector<16x32xf32>
    %cst_48 = arith.constant dense<0.000000e+00> : vector<16xf32>
    %144 = vector.multi_reduction <add>, %143, %cst_48 [1] : vector<16x32xf32> to vector<16xf32>
    %145 = vector.shape_cast %144 : vector<16xf32> to vector<16x1xf32>
    %cst_49 = arith.constant 3.200000e+01 : f32
    %146 = vector.broadcast %cst_49 : f32 to vector<16x1xf32>
    %147 = arith.divf %145, %146 : vector<16x1xf32>
    %148 = vector.broadcast %140 : vector<16x1xf32> to vector<16x32xf32>
    %149 = arith.subf %136, %148 : vector<16x32xf32>
    %cst_50 = arith.constant 9.99999974E-6 : f32
    %150 = vector.broadcast %cst_50 : f32 to vector<16x1xf32>
    %151 = arith.addf %147, %150 : vector<16x1xf32>
    %152 = math.rsqrt %151 : vector<16x1xf32>
    %153 = vector.broadcast %152 : vector<16x1xf32> to vector<16x32xf32>
    %154 = arith.mulf %149, %153 : vector<16x32xf32>
    %155 = vector.broadcast %11 : vector<1x32xf32> to vector<16x32xf32>
    %156 = arith.mulf %154, %155 : vector<16x32xf32>
    %157 = vector.broadcast %12 : vector<1x32xf32> to vector<16x32xf32>
    %158 = arith.addf %156, %157 : vector<16x32xf32>
    %cst_51 = arith.constant dense<0.000000e+00> : vector<16x64xf32>
    %159 = tpu.matmul %158, %3, %cst_51 {dimension_numbers = #tpu.dot_dimension_numbers<[1], [0], [0], [1], [0, 0, 1, 1], [], []>} : vector<16x32xf32>, vector<32x64xf32>, vector<16x64xf32> -> vector<16x64xf32>
    %160 = vector.broadcast %7 : vector<1x64xf32> to vector<16x64xf32>
    %161 = arith.addf %159, %160 : vector<16x64xf32>
    %cst_52 = arith.constant 0.000000e+00 : f32
    %162 = vector.broadcast %cst_52 : f32 to vector<16x64xf32>
    %163 = arith.maximumf %161, %162 : vector<16x64xf32>
    %cst_53 = arith.constant dense<0.000000e+00> : vector<16x32xf32>
    %164 = tpu.matmul %163, %4, %cst_53 {dimension_numbers = #tpu.dot_dimension_numbers<[1], [0], [0], [1], [0, 0, 1, 1], [], []>} : vector<16x64xf32>, vector<64x32xf32>, vector<16x32xf32> -> vector<16x32xf32>
    %165 = vector.broadcast %8 : vector<1x32xf32> to vector<16x32xf32>
    %166 = arith.addf %164, %165 : vector<16x32xf32>
    %167 = arith.addf %136, %166 : vector<16x32xf32>
    %c0_54 = arith.constant 0 : index
    %c0_55 = arith.constant 0 : index
    %168 = vector.load %arg3[%c0_54, %c0_55] : memref<16x32xf32, #tpu.memory_space<vmem>>, vector<16x32xf32>
    tpu.vector_store %arg3[%c0_54, %c0_55], %167 {strides = array<i32>} : memref<16x32xf32, #tpu.memory_space<vmem>>, vector<16x32xf32>,
    return
  }
}

</mosaic_0001>

<llo_original>
// kernel: fwd.1
$region0: #{fwd.1}
  #allocation0 [shape = 'u32[]', space=smem, size = 0x4, offset = 0x4, fixed_abs, tag = 'smem constant byte address 0x4 - core index']
  #allocation1 [shape = 'u32[144,128]{1,0:T(1,128)}', space=vmem, size = 0x12000, scoped, tag = 'internal scratch']
  %s0 = inlined_call_operand.hbm [shape: f32[16,32], index: 0, kind: input, shape index: {}]
  %s1 = inlined_call_operand.hbm [shape: f32[64,416], index: 1, kind: input, shape index: {}]
  %s2 = inlined_call_operand.hbm [shape: f32[24,128], index: 2, kind: input, shape index: {}]
  %s3 = inlined_call_operand.hbm [shape: f32[16,32], index: 3, kind: output, shape index: {}]
  %s4 = sld [smem:[#allocation0]]
  $region34: #{fwd.1} parent=0
    _
  %s6 = ssub.s32 1, %s4
  %s7 = scalar_select 0, %s6, %s4
  $region1: #{fwd.1} parent=0
    #allocation2 [shape = 'u8[8192]{0}', space=vmem, size = 0x2000, scoped, tag = 'input window, operand 0, single buffered']
    #allocation3 [shape = 's32[1]{0}', space=sflag, size = 0x4, scoped, tag = 'scoped memory for fwd.1']
    #allocation4 [shape = 's32[1]{0}', space=sflag, size = 0x4, scoped, tag = 'scoped memory for fwd.1']
    #allocation5 [shape = 'u8[131072]{0}', space=vmem, size = 0x20000, scoped, tag = 'input window, operand 1, single buffered']
    #allocation6 [shape = 's32[1]{0}', space=sflag, size = 0x4, scoped, tag = 'scoped memory for fwd.1']
    #allocation7 [shape = 'u8[12288]{0}', space=vmem, size = 0x3000, scoped, tag = 'input window, operand 2, single buffered']
    #allocation8 [shape = 'u8[8192]{0}', space=vmem, size = 0x2000, scoped, tag = 'output window, operand 0, single buffered']
    %8 = vsyncpa [#allocation3], 0
    %9 = vsyncpa [#allocation6], 0
    %10 = vsyncpa [#allocation4], 0
    // Predicated region
    $region2: #{fwd.1} parent=1 // pred_check
      _
    $region3: #{fwd.1} parent=1 // pred_check_branch
      %12 = sbr.rel (0) target = $region5
    $region4: #{fwd.1} parent=1 // pred_region
      %s14 = ssub.s32 256, 256
      %15 = vsyncadd [#allocation3], %s14
      %s16 = sshll.u32 [#allocation2], 4
      %s17 = int_to_ptr.vmem [resolvable:$true] %s16
      %22 = dma.hbm_to_vmem [thread:$0]  %s0, 256, %s17, [#allocation3], 128, 128, 8
    $region5: #{fwd.1} parent=1 // pred_fallthru
      _
    // Predicated region
    $region6: #{fwd.1} parent=1 // pred_check
      _
    $region7: #{fwd.1} parent=1 // pred_check_branch
      %24 = sbr.rel (0) target = $region9
    $region8: #{fwd.1} parent=1 // pred_region
      %s26 = ssub.s32 4096, 4096
      %27 = vsyncadd [#allocation6], %s26
      %s28 = sshll.u32 [#allocation5], 4
      %s29 = int_to_ptr.vmem [resolvable:$true] %s28
      %34 = dma.hbm_to_vmem [thread:$0]  %s1, 4096, %s29, [#allocation6], 512, 512, 32
    $region9: #{fwd.1} parent=1 // pred_fallthru
      _
    // Predicated region
    $region10: #{fwd.1} parent=1 // pred_check
      _
    $region11: #{fwd.1} parent=1 // pred_check_branch
      %36 = sbr.rel (0) target = $region13
    $region12: #{fwd.1} parent=1 // pred_region
      %s38 = ssub.s32 384, 384
      %39 = vsyncadd [#allocation6], %s38
      %s40 = sshll.u32 [#allocation7], 4
      %s41 = int_to_ptr.vmem [resolvable:$true] %s40
      %46 = dma.hbm_to_vmem [thread:$0]  %s2, 384, %s41, [#allocation6], 128, 128, 8
    $region13: #{fwd.1} parent=1 // pred_fallthru
      _
    // Predicated region
    $region14: #{fwd.1} parent=1 // pred_check
      _
    $region15: #{fwd.1} parent=1 // pred_check_branch
      %48 = sbr.rel (0) target = $region17
    $region16: #{fwd.1} parent=1 // pred_region
      %49 = dma.done [#allocation3], 256
    $region17: #{fwd.1} parent=1 // pred_fallthru
      _
    // Predicated region
    $region18: #{fwd.1} parent=1 // pred_check
      _
    $region19: #{fwd.1} parent=1 // pred_check_branch
      %51 = sbr.rel (0) target = $region21
    $region20: #{fwd.1} parent=1 // pred_region
      %52 = dma.done [#allocation6], 4096
    $region21: #{fwd.1} parent=1 // pred_fallthru
      _
    // Predicated region
    $region22: #{fwd.1} parent=1 // pred_check
      _
    $region23: #{fwd.1} parent=1 // pred_check_branch
      %54 = sbr.rel (0) target = $region25
    $region24: #{fwd.1} parent=1 // pred_region
      %55 = dma.done [#allocation6], 384
    $region25: #{fwd.1} parent=1 // pred_fallthru
      _
    %v56 = vld [vmem:[#allocation2] sm:$0xff]
    %v57 = vld [vmem:[#allocation2 + $0x8] sm:$0xff]
    %v58 = vld [vmem:[#allocation5] sm:$0xff]
    %v59 = vld [vmem:[#allocation5 + $0x20] sm:$0xff]
    %v60 = vld [vmem:[#allocation5 + $0x40] sm:$0xff]
    %v61 = vld [vmem:[#allocation5 + $0x60] sm:$0xff]
    %v62 = vld [vmem:[#allocation5 + $0x8] sm:$0xff]
    %v63 = vld [vmem:[#allocation5 + $0x28] sm:$0xff]
    %v64 = vld [vmem:[#allocation5 + $0x48] sm:$0xff]
    %v65 = vld [vmem:[#allocation5 + $0x68] sm:$0xff]
    %v66 = vld [vmem:[#allocation5 + $0x10] sm:$0xff]
    %v67 = vld [vmem:[#allocation5 + $0x30] sm:$0xff]
    %v68 = vld [vmem:[#allocation5 + $0x50] sm:$0xff]
    %v69 = vld [vmem:[#allocation5 + $0x70] sm:$0xff]
    %v70 = vld [vmem:[#allocation5 + $0x18] sm:$0xff]
    %v71 = vld [vmem:[#allocation5 + $0x38] sm:$0xff]
    %v72 = vld [vmem:[#allocation5 + $0x58] sm:$0xff]
    %v73 = vld [vmem:[#allocation5 + $0x78] sm:$0xff]
    %v74 = vld [vmem:[#allocation5 + $0x98] sm:$0xff]
    %v75 = vld [vmem:[#allocation5 + $0xb8] sm:$0xff]
    %v76 = vld [vmem:[#allocation5 + $0xd8] sm:$0xff]
    %v77 = vld [vmem:[#allocation5 + $0xf8] sm:$0xff]
    %v78 = vld [vmem:[#allocation7] sm:$0x1]
    %v79 = vld [vmem:[#allocation7 + $0x1] sm:$0x1]
    %v80 = vld [vmem:[#allocation7 + $0x2] sm:$0x1]
    %v81 = vld [vmem:[#allocation7 + $0x3] sm:$0x1]
    %v82 = vld [vmem:[#allocation7 + $0x4] sm:$0x1]
    %v83 = vld [vmem:[#allocation7 + $0x5] sm:$0x1]
    %v84 = vld [vmem:[#allocation7 + $0x6] sm:$0x1]
    %v85 = vld [vmem:[#allocation7 + $0x7] sm:$0x1]
    %v86 = vld [vmem:[#allocation7 + $0x8] sm:$0xff]
    %v87 = vld [vmem:[#allocation7 + $0x10] sm:$0xff]
    %vm88 = vcmask 261120
    %v89 = vsel %vm88, %v56, 0.0
    %90 = vadd.xlane.f32.xlu0 %v89
    %v91 = vpop.xlane.xlu0 %90
    %v92 = vsel %vm88, %v57, 0.0
    %93 = vadd.xlane.f32.xlu0 %v92
    %v94 = vpop.xlane.xlu0 %93
    %v95 = vrcp.pop 32.0
    %v96 = vmul.f32 %v91, %v95
    %v97 = vmul.f32 %v94, %v95
    %v98 = vsub.f32 %v56, %v96
    %v99 = vsub.f32 %v57, %v97
    %v100 = vmul.f32 %v98, %v98
    %v101 = vmul.f32 %v99, %v99
    %v102 = vsel %vm88, %v100, 0.0
    %103 = vadd.xlane.f32.xlu0 %v102
    %v104 = vpop.xlane.xlu0 %103
    %v105 = vsel %vm88, %v101, 0.0
    %106 = vadd.xlane.f32.xlu0 %v105
    %v107 = vpop.xlane.xlu0 %106
    %v108 = vmul.f32 %v104, %v95
    %v109 = vmul.f32 %v107, %v95
    %v110 = vadd.f32 %v108, 1e-05
    %v111 = vadd.f32 %v109, 1e-05
    %v112 = vrsqrt.pop %v110
    %v113 = vrsqrt.pop %v111
    %v114 = vmul.f32 %v98, %v112
    %v115 = vmul.f32 %v99, %v113
    %v116 = vlaneseq
    %v117 = vshrl.u32 %v116, 7
    %v118 = vsub.s32 0, %v117
    %v119 = vrot.slane %v82, %v118
    %v120 = vmul.f32 %v114, %v119
    %v121 = vmul.f32 %v115, %v119
    %v122 = vlaneseq
    %v123 = vshrl.u32 %v122, 7
    %v124 = vsub.s32 0, %v123
    %v125 = vrot.slane %v83, %v124
    %v126 = vadd.f32 %v120, %v125
    %v127 = vadd.f32 %v121, %v125
    %v128 = vlaneseq
    %v129 = vshrl.u32 %v128, 7
    %v130 = vsub.s32 0, %v129
    %v131 = vrot.slane %v78, %v130
    %v133 = vsel %vm88, %v126, 0
    %v136 = vsel %vm88, %v127, 0
    %138 = vmatprep.subr.mxu0 0.0
    %139 = vmatpush1.msra.mxu0 0.0
    %140 = vmatprep.subr.mxu0 0.0
    %141 = vmatpush1.msra.mxu0 0.0
    %142 = vmatprep.subr.mxu0 0.0
    %143 = vmatpush1.msra.mxu0 0.0
    %144 = vmatprep.subr.mxu0 0.0
    %145 = vmatpush1.msra.mxu0 0.0
    %146 = vmatprep.subr.mxu0 0.0
    %147 = vmatpush1.msra.mxu0 0.0
    %148 = vmatprep.subr.mxu0 0.0
    %149 = vmatpush1.msra.mxu0 0.0
    %150 = vmatprep.subr.mxu0 0.0
    %151 = vmatpush1.msra.mxu0 0.0
    %152 = vmatprep.subr.mxu0 0.0
    %153 = vmatpush1.msra.mxu0 0.0
    %154 = vmatprep.subr.mxu0 0.0
    %155 = vmatpush1.msra.mxu0 0.0
    %156 = vmatprep.subr.mxu0 0.0
    %157 = vmatpush1.msra.mxu0 0.0
    %158 = vmatprep.subr.mxu0 0.0
    %159 = vmatpush1.msra.mxu0 0.0
    %160 = vmatprep.subr.mxu0 0.0
    %161 = vmatpush1.msra.mxu0 0.0
    %162 = vmatprep.subr.mxu0 0.0
    %163 = vmatpush1.msra.mxu0 %v61
    %164 = vmatprep.subr.mxu0 0.0
    %165 = vmatpush1.msra.mxu0 %v60
    %166 = vmatprep.subr.mxu0 0.0
    %167 = vmatpush1.msra.mxu0 %v59
    %168 = vmatprep.subr.mxu0 0.0
    %169 = vmatpush1.msra.mxu0 %v58
    %170 = vmatprep.subr.mxu0 0.0
    %171 = vmatpush2.msra.mxu0 0.0
    %172 = vmatprep.subr.mxu0 0.0
    %173 = vmatpush2.msra.mxu0 0.0
    %174 = vmatprep.subr.mxu0 0.0
    %175 = vmatpush2.msra.mxu0 0.0
    %176 = vmatprep.subr.mxu0 0.0
    %177 = vmatpush2.msra.mxu0 0.0
    %178 = vmatprep.subr.mxu0 0.0
    %179 = vmatpush2.msra.mxu0 0.0
    %180 = vmatprep.subr.mxu0 0.0
    %181 = vmatpush2.msra.mxu0 0.0
    %182 = vmatprep.subr.mxu0 0.0
    %183 = vmatpush2.msra.mxu0 0.0
    %184 = vmatprep.subr.mxu0 0.0
    %185 = vmatpush2.msra.mxu0 0.0
    %186 = vmatprep.subr.mxu0 0.0
    %187 = vmatpush2.msra.mxu0 0.0
    %188 = vmatprep.subr.mxu0 0.0
    %189 = vmatpush2.msra.mxu0 0.0
    %190 = vmatprep.subr.mxu0 0.0
    %191 = vmatpush2.msra.mxu0 0.0
    %192 = vmatprep.subr.mxu0 0.0
    %193 = vmatpush2.msra.mxu0 0.0
    %194 = vmatprep.subr.mxu0 0.0
    %195 = vmatpush2.msra.mxu0 0.0
    %196 = vmatprep.subr.mxu0 0.0
    %197 = vmatpush2.msra.mxu0 0.0
    %198 = vmatprep.subr.mxu0 0.0
    %199 = vmatpush2.msra.mxu0 0.0
    %200 = vmatprep.subr.mxu0 0.0
    %201 = vmatpush2.msra.mxu0 0.0
    %202 = vmatprep.mubr.f32.mxu0 0.0
    %203 = vmatmul.mubr.f32.gmra.mxu0 %v133
    %v204 = vpop.f32.mrf.mxu0
    %v205 = vadd.f32 %v131, %v204
    %v206 = vpop.f32.mrf.mxu0
    %207 = vmatprep.mubr.f32.mxu0 0.0
    %208 = vmatmul.mubr.f32.gmra.mxu0 %v136
    %v209 = vpop.f32.mrf.mxu0
    %v210 = vadd.f32 %v131, %v209
    %v211 = vpop.f32.mrf.mxu0
    %212 = vdwg.mxu0
    %215 = vrot.lane.b32.xlu0 %v205, 96
    %v216 = vpop.permute.xlu0 %215
    %217 = vrot.lane.b32.xlu0 %v210, 96
    %v218 = vpop.permute.xlu0 %217
    %vm219 = vcmask 64512
    %v220 = vsel %vm219, %v205, 0
    %v222 = vsel %vm219, %v210, 0
    %v224 = vsel %vm219, %v216, 0
    %v226 = vsel %vm219, %v218, 0
    %228 = vmatprep.subr.mxu0 0.0
    %229 = vmatpush1.xpose.msra.mxu0 0.0
    %230 = vmatprep.subr.mxu0 0.0
    %231 = vmatpush1.xpose.msra.mxu0 0.0
    %232 = vmatprep.subr.mxu0 0.0
    %233 = vmatpush1.xpose.msra.mxu0 0.0
    %234 = vmatprep.subr.mxu0 0.0
    %235 = vmatpush1.xpose.msra.mxu0 0.0
    %236 = vmatprep.subr.mxu0 0.0
    %237 = vmatpush1.xpose.msra.mxu0 0.0
    %238 = vmatprep.subr.mxu0 0.0
    %239 = vmatpush1.xpose.msra.mxu0 0.0
    %240 = vmatprep.subr.mxu0 0.0
    %241 = vmatpush1.xpose.msra.mxu0 0.0
    %242 = vmatprep.subr.mxu0 0.0
    %243 = vmatpush1.xpose.msra.mxu0 0.0
    %244 = vmatprep.subr.mxu0 0.0
    %245 = vmatpush1.xpose.msra.mxu0 0.0
    %246 = vmatprep.subr.mxu0 0.0
    %247 = vmatpush1.xpose.msra.mxu0 0.0
    %248 = vmatprep.subr.mxu0 0.0
    %249 = vmatpush1.xpose.msra.mxu0 0.0
    %250 = vmatprep.subr.mxu0 0.0
    %251 = vmatpush1.xpose.msra.mxu0 0.0
    %252 = vmatprep.subr.mxu0 0.0
    %253 = vmatpush1.xpose.msra.mxu0 0.0
    %254 = vmatprep.subr.mxu0 0.0
    %255 = vmatpush1.xpose.msra.mxu0 0.0
    %256 = vmatprep.subr.mxu0 0.0
    %257 = vmatpush1.xpose.msra.mxu0 %v226
    %258 = vmatprep.subr.mxu0 0.0
    %259 = vmatpush1.xpose.msra.mxu0 %v224
    %260 = vmatprep.subr.mxu0 0.0
    %261 = vmatpush2.xpose.msra.mxu0 0.0
    %262 = vmatprep.subr.mxu0 0.0
    %263 = vmatpush2.xpose.msra.mxu0 0.0
    %264 = vmatprep.subr.mxu0 0.0
    %265 = vmatpush2.xpose.msra.mxu0 0.0
    %266 = vmatprep.subr.mxu0 0.0
    %267 = vmatpush2.xpose.msra.mxu0 0.0
    %268 = vmatprep.subr.mxu0 0.0
    %269 = vmatpush2.xpose.msra.mxu0 0.0
    %270 = vmatprep.subr.mxu0 0.0
    %271 = vmatpush2.xpose.msra.mxu0 0.0
    %272 = vmatprep.subr.mxu0 0.0
    %273 = vmatpush2.xpose.msra.mxu0 0.0
    %274 = vmatprep.subr.mxu0 0.0
    %275 = vmatpush2.xpose.msra.mxu0 0.0
    %276 = vmatprep.subr.mxu0 0.0
    %277 = vmatpush2.xpose.msra.mxu0 0.0
    %278 = vmatprep.subr.mxu0 0.0
    %279 = vmatpush2.xpose.msra.mxu0 0.0
    %280 = vmatprep.subr.mxu0 0.0
    %281 = vmatpush2.xpose.msra.mxu0 0.0
    %282 = vmatprep.subr.mxu0 0.0
    %283 = vmatpush2.xpose.msra.mxu0 0.0
    %284 = vmatprep.subr.mxu0 0.0
    %285 = vmatpush2.xpose.msra.mxu0 0.0
    %286 = vmatprep.subr.mxu0 0.0
    %287 = vmatpush2.xpose.msra.mxu0 0.0
    %288 = vmatprep.subr.mxu0 0.0
    %289 = vmatpush2.xpose.msra.mxu0 0.0
    %290 = vmatprep.subr.mxu0 0.0
    %291 = vmatpush2.xpose.msra.mxu0 0.0
    %292 = vmatprep.mubr.f32.mxu0 0.0
    %293 = vmatmul.mubr.f32.gmra.mxu0 %v220
    %v294 = vpop.f32.mrf.mxu0
    %v295 = vadd.f32 %v86, %v294
    %v296 = vpop.f32.mrf.mxu0
    %297 = vmatprep.mubr.f32.mxu0 0.0
    %298 = vmatmul.mubr.f32.gmra.mxu0 %v222
    %v299 = vpop.f32.mrf.mxu0
    %v300 = vadd.f32 %v87, %v299
    %v301 = vpop.f32.mrf.mxu0
    %302 = vdwg.mxu0
    %vm303 = vcmask 130048
    %v304 = vsel %vm303, %v295, -inf
    %305 = vmax.xlane.f32.xlu0 %v304
    %v306 = vpop.xlane.xlu0 %305
    %v307 = vsel %vm303, %v300, -inf
    %308 = vmax.xlane.f32.xlu0 %v307
    %v309 = vpop.xlane.xlu0 %308
    %v310 = vsub.f32 %v295, %v306
    %v311 = vsub.f32 %v300, %v309
    %v312 = vmul.f32 %v310, 1.442695
    %v313 = vpow.pop %v312
    %v314 = vmul.f32 %v311, 1.442695
    %v315 = vpow.pop %v314
    %v316 = vsel %vm303, %v313, 0.0
    %317 = vadd.xlane.f32.xlu0 %v316
    %v318 = vpop.xlane.xlu0 %317
    %v319 = vsel %vm303, %v315, 0.0
    %320 = vadd.xlane.f32.xlu0 %v319
    %v321 = vpop.xlane.xlu0 %320
    %v322 = vrcp.pop %v318
    %v323 = vrcp.pop %v321
    %v324 = vmul.f32 %v318, %v322
    %v325 = vmul.f32 %v321, %v323
    %v326 = vsub.f32 2.0, %v324
    %v327 = vsub.f32 2.0, %v325
    %v328 = vmul.f32 %v322, %v326
    %v329 = vmul.f32 %v323, %v327
    %v330 = vmul.f32 %v313, %v328
    %v331 = vmul.f32 %v315, %v329
    %332 = vrot.lane.b32.xlu0 %v205, 64
    %v333 = vpop.permute.xlu0 %332
    %334 = vrot.lane.b32.xlu0 %v210, 64
    %v335 = vpop.permute.xlu0 %334
    %v339 = vsel %vm303, %v330, 0
    %v342 = vsel %vm303, %v331, 0
    %344 = vmatprep.subr.mxu0 0.0
    %345 = vmatpush1.msra.mxu0 0.0
    %346 = vmatprep.subr.mxu0 0.0
    %347 = vmatpush1.msra.mxu0 0.0
    %348 = vmatprep.subr.mxu0 0.0
    %349 = vmatpush1.msra.mxu0 0.0
    %350 = vmatprep.subr.mxu0 0.0
    %351 = vmatpush1.msra.mxu0 0.0
    %352 = vmatprep.subr.mxu0 0.0
    %353 = vmatpush1.msra.mxu0 0.0
    %354 = vmatprep.subr.mxu0 0.0
    %355 = vmatpush1.msra.mxu0 0.0
    %356 = vmatprep.subr.mxu0 0.0
    %357 = vmatpush1.msra.mxu0 0.0
    %358 = vmatprep.subr.mxu0 0.0
    %359 = vmatpush1.msra.mxu0 0.0
    %360 = vmatprep.subr.mxu0 0.0
    %361 = vmatpush1.msra.mxu0 0.0
    %362 = vmatprep.subr.mxu0 0.0
    %363 = vmatpush1.msra.mxu0 0.0
    %364 = vmatprep.subr.mxu0 0.0
    %365 = vmatpush1.msra.mxu0 0.0
    %366 = vmatprep.subr.mxu0 0.0
    %367 = vmatpush1.msra.mxu0 0.0
    %368 = vmatprep.subr.mxu0 0.0
    %369 = vmatpush1.msra.mxu0 0.0
    %370 = vmatprep.subr.mxu0 0.0
    %371 = vmatpush1.msra.mxu0 0.0
    %372 = vmatprep.subr.mxu0 0.0
    %373 = vmatpush1.msra.mxu0 %v335
    %374 = vmatprep.subr.mxu0 0.0
    %375 = vmatpush1.msra.mxu0 %v333
    %376 = vmatprep.subr.mxu0 0.0
    %377 = vmatpush2.msra.mxu0 0.0
    %378 = vmatprep.subr.mxu0 0.0
    %379 = vmatpush2.msra.mxu0 0.0
    %380 = vmatprep.subr.mxu0 0.0
    %381 = vmatpush2.msra.mxu0 0.0
    %382 = vmatprep.subr.mxu0 0.0
    %383 = vmatpush2.msra.mxu0 0.0
    %384 = vmatprep.subr.mxu0 0.0
    %385 = vmatpush2.msra.mxu0 0.0
    %386 = vmatprep.subr.mxu0 0.0
    %387 = vmatpush2.msra.mxu0 0.0
    %388 = vmatprep.subr.mxu0 0.0
    %389 = vmatpush2.msra.mxu0 0.0
    %390 = vmatprep.subr.mxu0 0.0
    %391 = vmatpush2.msra.mxu0 0.0
    %392 = vmatprep.subr.mxu0 0.0
    %393 = vmatpush2.msra.mxu0 0.0
    %394 = vmatprep.subr.mxu0 0.0
    %395 = vmatpush2.msra.mxu0 0.0
    %396 = vmatprep.subr.mxu0 0.0
    %397 = vmatpush2.msra.mxu0 0.0
    %398 = vmatprep.subr.mxu0 0.0
    %399 = vmatpush2.msra.mxu0 0.0
    %400 = vmatprep.subr.mxu0 0.0
    %401 = vmatpush2.msra.mxu0 0.0
    %402 = vmatprep.subr.mxu0 0.0
    %403 = vmatpush2.msra.mxu0 0.0
    %404 = vmatprep.subr.mxu0 0.0
    %405 = vmatpush2.msra.mxu0 0.0
    %406 = vmatprep.subr.mxu0 0.0
    %407 = vmatpush2.msra.mxu0 0.0
    %408 = vmatprep.mubr.f32.mxu0 0.0
    %409 = vmatmul.mubr.f32.gmra.mxu0 %v339
    %v410 = vpop.f32.mrf.mxu0
    %v411 = vadd.f32 0.0, %v410
    %v412 = vpop.f32.mrf.mxu0
    %413 = vmatprep.mubr.f32.mxu0 0.0
    %414 = vmatmul.mubr.f32.gmra.mxu0 %v342
    %v415 = vpop.f32.mrf.mxu0
    %v416 = vadd.f32 0.0, %v415
    %v417 = vpop.f32.mrf.mxu0
    %418 = vdwg.mxu0
    %419 = vrot.lane.b32.xlu0 %v205, 120
    %v420 = vpop.permute.xlu0 %419
    %421 = vrot.lane.b32.xlu0 %v210, 120
    %v422 = vpop.permute.xlu0 %421
    %423 = vrot.lane.b32.xlu0 %v205, 88
    %v424 = vpop.permute.xlu0 %423
    %425 = vrot.lane.b32.xlu0 %v210, 88
    %v426 = vpop.permute.xlu0 %425
    %v427 = vsel %vm219, %v420, 0
    %v429 = vsel %vm219, %v422, 0
    %v431 = vsel %vm219, %v424, 0
    %v433 = vsel %vm219, %v426, 0
    %435 = vmatprep.subr.mxu0 0.0
    %436 = vmatpush1.xpose.msra.mxu0 0.0
    %437 = vmatprep.subr.mxu0 0.0
    %438 = vmatpush1.xpose.msra.mxu0 0.0
    %439 = vmatprep.subr.mxu0 0.0
    %440 = vmatpush1.xpose.msra.mxu0 0.0
    %441 = vmatprep.subr.mxu0 0.0
    %442 = vmatpush1.xpose.msra.mxu0 0.0
    %443 = vmatprep.subr.mxu0 0.0
    %444 = vmatpush1.xpose.msra.mxu0 0.0
    %445 = vmatprep.subr.mxu0 0.0
    %446 = vmatpush1.xpose.msra.mxu0 0.0
    %447 = vmatprep.subr.mxu0 0.0
    %448 = vmatpush1.xpose.msra.mxu0 0.0
    %449 = vmatprep.subr.mxu0 0.0
    %450 = vmatpush1.xpose.msra.mxu0 0.0
    %451 = vmatprep.subr.mxu0 0.0
    %452 = vmatpush1.xpose.msra.mxu0 0.0
    %453 = vmatprep.subr.mxu0 0.0
    %454 = vmatpush1.xpose.msra.mxu0 0.0
    %455 = vmatprep.subr.mxu0 0.0
    %456 = vmatpush1.xpose.msra.mxu0 0.0
    %457 = vmatprep.subr.mxu0 0.0
    %458 = vmatpush1.xpose.msra.mxu0 0.0
    %459 = vmatprep.subr.mxu0 0.0
    %460 = vmatpush1.xpose.msra.mxu0 0.0
    %461 = vmatprep.subr.mxu0 0.0
    %462 = vmatpush1.xpose.msra.mxu0 0.0
    %463 = vmatprep.subr.mxu0 0.0
    %464 = vmatpush1.xpose.msra.mxu0 %v433
    %465 = vmatprep.subr.mxu0 0.0
    %466 = vmatpush1.xpose.msra.mxu0 %v431
    %467 = vmatprep.subr.mxu0 0.0
    %468 = vmatpush2.xpose.msra.mxu0 0.0
    %469 = vmatprep.subr.mxu0 0.0
    %470 = vmatpush2.xpose.msra.mxu0 0.0
    %471 = vmatprep.subr.mxu0 0.0
    %472 = vmatpush2.xpose.msra.mxu0 0.0
    %473 = vmatprep.subr.mxu0 0.0
    %474 = vmatpush2.xpose.msra.mxu0 0.0
    %475 = vmatprep.subr.mxu0 0.0
    %476 = vmatpush2.xpose.msra.mxu0 0.0
    %477 = vmatprep.subr.mxu0 0.0
    %478 = vmatpush2.xpose.msra.mxu0 0.0
    %479 = vmatprep.subr.mxu0 0.0
    %480 = vmatpush2.xpose.msra.mxu0 0.0
    %481 = vmatprep.subr.mxu0 0.0
    %482 = vmatpush2.xpose.msra.mxu0 0.0
    %483 = vmatprep.subr.mxu0 0.0
    %484 = vmatpush2.xpose.msra.mxu0 0.0
    %485 = vmatprep.subr.mxu0 0.0
    %486 = vmatpush2.xpose.msra.mxu0 0.0
    %487 = vmatprep.subr.mxu0 0.0
    %488 = vmatpush2.xpose.msra.mxu0 0.0
    %489 = vmatprep.subr.mxu0 0.0
    %490 = vmatpush2.xpose.msra.mxu0 0.0
    %491 = vmatprep.subr.mxu0 0.0
    %492 = vmatpush2.xpose.msra.mxu0 0.0
    %493 = vmatprep.subr.mxu0 0.0
    %494 = vmatpush2.xpose.msra.mxu0 0.0
    %495 = vmatprep.subr.mxu0 0.0
    %496 = vmatpush2.xpose.msra.mxu0 0.0
    %497 = vmatprep.subr.mxu0 0.0
    %498 = vmatpush2.xpose.msra.mxu0 0.0
    %499 = vmatprep.mubr.f32.mxu0 0.0
    %500 = vmatmul.mubr.f32.gmra.mxu0 %v427
    %v501 = vpop.f32.mrf.mxu0
    %v502 = vadd.f32 %v86, %v501
    %v503 = vpop.f32.mrf.mxu0
    %504 = vmatprep.mubr.f32.mxu0 0.0
    %505 = vmatmul.mubr.f32.gmra.mxu0 %v429
    %v506 = vpop.f32.mrf.mxu0
    %v507 = vadd.f32 %v87, %v506
    %v508 = vpop.f32.mrf.mxu0
    %509 = vdwg.mxu0
    %v510 = vsel %vm303, %v502, -inf
    %511 = vmax.xlane.f32.xlu0 %v510
    %v512 = vpop.xlane.xlu0 %511
    %v513 = vsel %vm303, %v507, -inf
    %514 = vmax.xlane.f32.xlu0 %v513
    %v515 = vpop.xlane.xlu0 %514
    %v516 = vsub.f32 %v502, %v512
    %v517 = vsub.f32 %v507, %v515
    %v518 = vmul.f32 %v516, 1.442695
    %v519 = vpow.pop %v518
    %v520 = vmul.f32 %v517, 1.442695
    %v521 = vpow.pop %v520
    %v522 = vsel %vm303, %v519, 0.0
    %523 = vadd.xlane.f32.xlu0 %v522
    %v524 = vpop.xlane.xlu0 %523
    %v525 = vsel %vm303, %v521, 0.0
    %526 = vadd.xlane.f32.xlu0 %v525
    %v527 = vpop.xlane.xlu0 %526
    %v528 = vrcp.pop %v524
    %v529 = vrcp.pop %v527
    %v530 = vmul.f32 %v524, %v528
    %v531 = vmul.f32 %v527, %v529
    %v532 = vsub.f32 2.0, %v530
    %v533 = vsub.f32 2.0, %v531
    %v534 = vmul.f32 %v528, %v532
    %v535 = vmul.f32 %v529, %v533
    %v536 = vmul.f32 %v519, %v534
    %v537 = vmul.f32 %v521, %v535
    %538 = vrot.lane.b32.xlu0 %v205, 56
    %v539 = vpop.permute.xlu0 %538
    %540 = vrot.lane.b32.xlu0 %v210, 56
    %v541 = vpop.permute.xlu0 %540
    %v545 = vsel %vm303, %v536, 0
    %v548 = vsel %vm303, %v537, 0
    %550 = vmatprep.subr.mxu0 0.0
    %551 = vmatpush1.msra.mxu0 0.0
    %552 = vmatprep.subr.mxu0 0.0
    %553 = vmatpush1.msra.mxu0 0.0
    %554 = vmatprep.subr.mxu0 0.0
    %555 = vmatpush1.msra.mxu0 0.0
    %556 = vmatprep.subr.mxu0 0.0
    %557 = vmatpush1.msra.mxu0 0.0
    %558 = vmatprep.subr.mxu0 0.0
    %559 = vmatpush1.msra.mxu0 0.0
    %560 = vmatprep.subr.mxu0 0.0
    %561 = vmatpush1.msra.mxu0 0.0
    %562 = vmatprep.subr.mxu0 0.0
    %563 = vmatpush1.msra.mxu0 0.0
    %564 = vmatprep.subr.mxu0 0.0
    %565 = vmatpush1.msra.mxu0 0.0
    %566 = vmatprep.subr.mxu0 0.0
    %567 = vmatpush1.msra.mxu0 0.0
    %568 = vmatprep.subr.mxu0 0.0
    %569 = vmatpush1.msra.mxu0 0.0
    %570 = vmatprep.subr.mxu0 0.0
    %571 = vmatpush1.msra.mxu0 0.0
    %572 = vmatprep.subr.mxu0 0.0
    %573 = vmatpush1.msra.mxu0 0.0
    %574 = vmatprep.subr.mxu0 0.0
    %575 = vmatpush1.msra.mxu0 0.0
    %576 = vmatprep.subr.mxu0 0.0
    %577 = vmatpush1.msra.mxu0 0.0
    %578 = vmatprep.subr.mxu0 0.0
    %579 = vmatpush1.msra.mxu0 %v541
    %580 = vmatprep.subr.mxu0 0.0
    %581 = vmatpush1.msra.mxu0 %v539
    %582 = vmatprep.subr.mxu0 0.0
    %583 = vmatpush2.msra.mxu0 0.0
    %584 = vmatprep.subr.mxu0 0.0
    %585 = vmatpush2.msra.mxu0 0.0
    %586 = vmatprep.subr.mxu0 0.0
    %587 = vmatpush2.msra.mxu0 0.0
    %588 = vmatprep.subr.mxu0 0.0
    %589 = vmatpush2.msra.mxu0 0.0
    %590 = vmatprep.subr.mxu0 0.0
    %591 = vmatpush2.msra.mxu0 0.0
    %592 = vmatprep.subr.mxu0 0.0
    %593 = vmatpush2.msra.mxu0 0.0
    %594 = vmatprep.subr.mxu0 0.0
    %595 = vmatpush2.msra.mxu0 0.0
    %596 = vmatprep.subr.mxu0 0.0
    %597 = vmatpush2.msra.mxu0 0.0
    %598 = vmatprep.subr.mxu0 0.0
    %599 = vmatpush2.msra.mxu0 0.0
    %600 = vmatprep.subr.mxu0 0.0
    %601 = vmatpush2.msra.mxu0 0.0
    %602 = vmatprep.subr.mxu0 0.0
    %603 = vmatpush2.msra.mxu0 0.0
    %604 = vmatprep.subr.mxu0 0.0
    %605 = vmatpush2.msra.mxu0 0.0
    %606 = vmatprep.subr.mxu0 0.0
    %607 = vmatpush2.msra.mxu0 0.0
    %608 = vmatprep.subr.mxu0 0.0
    %609 = vmatpush2.msra.mxu0 0.0
    %610 = vmatprep.subr.mxu0 0.0
    %611 = vmatpush2.msra.mxu0 0.0
    %612 = vmatprep.subr.mxu0 0.0
    %613 = vmatpush2.msra.mxu0 0.0
    %614 = vmatprep.mubr.f32.mxu0 0.0
    %615 = vmatmul.mubr.f32.gmra.mxu0 %v545
    %v616 = vpop.f32.mrf.mxu0
    %v617 = vadd.f32 0.0, %v616
    %v618 = vpop.f32.mrf.mxu0
    %619 = vmatprep.mubr.f32.mxu0 0.0
    %620 = vmatmul.mubr.f32.gmra.mxu0 %v548
    %v621 = vpop.f32.mrf.mxu0
    %v622 = vadd.f32 0.0, %v621
    %v623 = vpop.f32.mrf.mxu0
    %624 = vdwg.mxu0
    %v626 = vsel %vm219, %v617, 0
    %v629 = vsel %vm219, %v622, 0
    %631 = vmatprep.subr.mxu0 0.0
    %632 = vmatpush1.msra.mxu0 0.0
    %633 = vmatprep.subr.mxu0 0.0
    %634 = vmatpush1.msra.mxu0 0.0
    %635 = vmatprep.subr.mxu0 0.0
    %636 = vmatpush1.msra.mxu0 0.0
    %637 = vmatprep.subr.mxu0 0.0
    %638 = vmatpush1.msra.mxu0 0.0
    %639 = vmatprep.subr.mxu0 0.0
    %640 = vmatpush1.msra.mxu0 0.0
    %641 = vmatprep.subr.mxu0 0.0
    %642 = vmatpush1.msra.mxu0 0.0
    %643 = vmatprep.subr.mxu0 0.0
    %644 = vmatpush1.msra.mxu0 0.0
    %645 = vmatprep.subr.mxu0 0.0
    %646 = vmatpush1.msra.mxu0 0.0
    %647 = vmatprep.subr.mxu0 0.0
    %648 = vmatpush1.msra.mxu0 0.0
    %649 = vmatprep.subr.mxu0 0.0
    %650 = vmatpush1.msra.mxu0 0.0
    %651 = vmatprep.subr.mxu0 0.0
    %652 = vmatpush1.msra.mxu0 0.0
    %653 = vmatprep.subr.mxu0 0.0
    %654 = vmatpush1.msra.mxu0 0.0
    %655 = vmatprep.subr.mxu0 0.0
    %656 = vmatpush1.msra.mxu0 0.0
    %657 = vmatprep.subr.mxu0 0.0
    %658 = vmatpush1.msra.mxu0 0.0
    %659 = vmatprep.subr.mxu0 0.0
    %660 = vmatpush1.msra.mxu0 0.0
    %661 = vmatprep.subr.mxu0 0.0
    %662 = vmatpush1.msra.mxu0 %v63
    %663 = vmatprep.subr.mxu0 0.0
    %664 = vmatpush2.msra.mxu0 0.0
    %665 = vmatprep.subr.mxu0 0.0
    %666 = vmatpush2.msra.mxu0 0.0
    %667 = vmatprep.subr.mxu0 0.0
    %668 = vmatpush2.msra.mxu0 0.0
    %669 = vmatprep.subr.mxu0 0.0
    %670 = vmatpush2.msra.mxu0 0.0
    %671 = vmatprep.subr.mxu0 0.0
    %672 = vmatpush2.msra.mxu0 0.0
    %673 = vmatprep.subr.mxu0 0.0
    %674 = vmatpush2.msra.mxu0 0.0
    %675 = vmatprep.subr.mxu0 0.0
    %676 = vmatpush2.msra.mxu0 0.0
    %677 = vmatprep.subr.mxu0 0.0
    %678 = vmatpush2.msra.mxu0 0.0
    %679 = vmatprep.subr.mxu0 0.0
    %680 = vmatpush2.msra.mxu0 0.0
    %681 = vmatprep.subr.mxu0 0.0
    %682 = vmatpush2.msra.mxu0 0.0
    %683 = vmatprep.subr.mxu0 0.0
    %684 = vmatpush2.msra.mxu0 0.0
    %685 = vmatprep.subr.mxu0 0.0
    %686 = vmatpush2.msra.mxu0 0.0
    %687 = vmatprep.subr.mxu0 0.0
    %688 = vmatpush2.msra.mxu0 0.0
    %689 = vmatprep.subr.mxu0 0.0
    %690 = vmatpush2.msra.mxu0 0.0
    %691 = vmatprep.subr.mxu0 0.0
    %692 = vmatpush2.msra.mxu0 0.0
    %693 = vmatprep.subr.mxu0 0.0
    %694 = vmatpush2.msra.mxu0 0.0
    %695 = vmatprep.mubr.f32.mxu0 0.0
    %696 = vmatmul.mubr.f32.gmra.mxu0 %v626
    %v697 = vpop.f32.mrf.mxu0
    %v698 = vadd.f32 0.0, %v697
    %v699 = vpop.f32.mrf.mxu0
    %700 = vmatprep.mubr.f32.mxu0 0.0
    %701 = vmatmul.mubr.f32.gmra.mxu0 %v629
    %v702 = vpop.f32.mrf.mxu0
    %v703 = vadd.f32 0.0, %v702
    %v704 = vpop.f32.mrf.mxu0
    %705 = vdwg.mxu0
    %v707 = vsel %vm219, %v411, 0
    %v710 = vsel %vm219, %v416, 0
    %712 = vmatprep.subr.mxu0 0.0
    %713 = vmatpush1.msra.mxu0 0.0
    %714 = vmatprep.subr.mxu0 0.0
    %715 = vmatpush1.msra.mxu0 0.0
    %716 = vmatprep.subr.mxu0 0.0
    %717 = vmatpush1.msra.mxu0 0.0
    %718 = vmatprep.subr.mxu0 0.0
    %719 = vmatpush1.msra.mxu0 0.0
    %720 = vmatprep.subr.mxu0 0.0
    %721 = vmatpush1.msra.mxu0 0.0
    %722 = vmatprep.subr.mxu0 0.0
    %723 = vmatpush1.msra.mxu0 0.0
    %724 = vmatprep.subr.mxu0 0.0
    %725 = vmatpush1.msra.mxu0 0.0
    %726 = vmatprep.subr.mxu0 0.0
    %727 = vmatpush1.msra.mxu0 0.0
    %728 = vmatprep.subr.mxu0 0.0
    %729 = vmatpush1.msra.mxu0 0.0
    %730 = vmatprep.subr.mxu0 0.0
    %731 = vmatpush1.msra.mxu0 0.0
    %732 = vmatprep.subr.mxu0 0.0
    %733 = vmatpush1.msra.mxu0 0.0
    %734 = vmatprep.subr.mxu0 0.0
    %735 = vmatpush1.msra.mxu0 0.0
    %736 = vmatprep.subr.mxu0 0.0
    %737 = vmatpush1.msra.mxu0 0.0
    %738 = vmatprep.subr.mxu0 0.0
    %739 = vmatpush1.msra.mxu0 0.0
    %740 = vmatprep.subr.mxu0 0.0
    %741 = vmatpush1.msra.mxu0 0.0
    %742 = vmatprep.subr.mxu0 0.0
    %743 = vmatpush1.msra.mxu0 %v62
    %744 = vmatprep.subr.mxu0 0.0
    %745 = vmatpush2.msra.mxu0 0.0
    %746 = vmatprep.subr.mxu0 0.0
    %747 = vmatpush2.msra.mxu0 0.0
    %748 = vmatprep.subr.mxu0 0.0
    %749 = vmatpush2.msra.mxu0 0.0
    %750 = vmatprep.subr.mxu0 0.0
    %751 = vmatpush2.msra.mxu0 0.0
    %752 = vmatprep.subr.mxu0 0.0
    %753 = vmatpush2.msra.mxu0 0.0
    %754 = vmatprep.subr.mxu0 0.0
    %755 = vmatpush2.msra.mxu0 0.0
    %756 = vmatprep.subr.mxu0 0.0
    %757 = vmatpush2.msra.mxu0 0.0
    %758 = vmatprep.subr.mxu0 0.0
    %759 = vmatpush2.msra.mxu0 0.0
    %760 = vmatprep.subr.mxu0 0.0
    %761 = vmatpush2.msra.mxu0 0.0
    %762 = vmatprep.subr.mxu0 0.0
    %763 = vmatpush2.msra.mxu0 0.0
    %764 = vmatprep.subr.mxu0 0.0
    %765 = vmatpush2.msra.mxu0 0.0
    %766 = vmatprep.subr.mxu0 0.0
    %767 = vmatpush2.msra.mxu0 0.0
    %768 = vmatprep.subr.mxu0 0.0
    %769 = vmatpush2.msra.mxu0 0.0
    %770 = vmatprep.subr.mxu0 0.0
    %771 = vmatpush2.msra.mxu0 0.0
    %772 = vmatprep.subr.mxu0 0.0
    %773 = vmatpush2.msra.mxu0 0.0
    %774 = vmatprep.subr.mxu0 0.0
    %775 = vmatpush2.msra.mxu0 0.0
    %776 = vmatprep.mubr.f32.mxu0 0.0
    %777 = vmatmul.mubr.f32.gmra.mxu0 %v707
    %v778 = vpop.f32.mrf.mxu0
    %v779 = vadd.f32 %v698, %v778
    %v780 = vpop.f32.mrf.mxu0
    %781 = vmatprep.mubr.f32.mxu0 0.0
    %782 = vmatmul.mubr.f32.gmra.mxu0 %v710
    %v783 = vpop.f32.mrf.mxu0
    %v784 = vadd.f32 %v703, %v783
    %v785 = vpop.f32.mrf.mxu0
    %786 = vdwg.mxu0
    %787 = vrot.lane.b32.xlu0 %v205, 112
    %v788 = vpop.permute.xlu0 %787
    %789 = vrot.lane.b32.xlu0 %v210, 112
    %v790 = vpop.permute.xlu0 %789
    %791 = vrot.lane.b32.xlu0 %v205, 80
    %v792 = vpop.permute.xlu0 %791
    %793 = vrot.lane.b32.xlu0 %v210, 80
    %v794 = vpop.permute.xlu0 %793
    %v795 = vsel %vm219, %v788, 0
    %v797 = vsel %vm219, %v790, 0
    %v799 = vsel %vm219, %v792, 0
    %v801 = vsel %vm219, %v794, 0
    %803 = vmatprep.subr.mxu0 0.0
    %804 = vmatpush1.xpose.msra.mxu0 0.0
    %805 = vmatprep.subr.mxu0 0.0
    %806 = vmatpush1.xpose.msra.mxu0 0.0
    %807 = vmatprep.subr.mxu0 0.0
    %808 = vmatpush1.xpose.msra.mxu0 0.0
    %809 = vmatprep.subr.mxu0 0.0
    %810 = vmatpush1.xpose.msra.mxu0 0.0
    %811 = vmatprep.subr.mxu0 0.0
    %812 = vmatpush1.xpose.msra.mxu0 0.0
    %813 = vmatprep.subr.mxu0 0.0
    %814 = vmatpush1.xpose.msra.mxu0 0.0
    %815 = vmatprep.subr.mxu0 0.0
    %816 = vmatpush1.xpose.msra.mxu0 0.0
    %817 = vmatprep.subr.mxu0 0.0
    %818 = vmatpush1.xpose.msra.mxu0 0.0
    %819 = vmatprep.subr.mxu0 0.0
    %820 = vmatpush1.xpose.msra.mxu0 0.0
    %821 = vmatprep.subr.mxu0 0.0
    %822 = vmatpush1.xpose.msra.mxu0 0.0
    %823 = vmatprep.subr.mxu0 0.0
    %824 = vmatpush1.xpose.msra.mxu0 0.0
    %825 = vmatprep.subr.mxu0 0.0
    %826 = vmatpush1.xpose.msra.mxu0 0.0
    %827 = vmatprep.subr.mxu0 0.0
    %828 = vmatpush1.xpose.msra.mxu0 0.0
    %829 = vmatprep.subr.mxu0 0.0
    %830 = vmatpush1.xpose.msra.mxu0 0.0
    %831 = vmatprep.subr.mxu0 0.0
    %832 = vmatpush1.xpose.msra.mxu0 %v801
    %833 = vmatprep.subr.mxu0 0.0
    %834 = vmatpush1.xpose.msra.mxu0 %v799
    %835 = vmatprep.subr.mxu0 0.0
    %836 = vmatpush2.xpose.msra.mxu0 0.0
    %837 = vmatprep.subr.mxu0 0.0
    %838 = vmatpush2.xpose.msra.mxu0 0.0
    %839 = vmatprep.subr.mxu0 0.0
    %840 = vmatpush2.xpose.msra.mxu0 0.0
    %841 = vmatprep.subr.mxu0 0.0
    %842 = vmatpush2.xpose.msra.mxu0 0.0
    %843 = vmatprep.subr.mxu0 0.0
    %844 = vmatpush2.xpose.msra.mxu0 0.0
    %845 = vmatprep.subr.mxu0 0.0
    %846 = vmatpush2.xpose.msra.mxu0 0.0
    %847 = vmatprep.subr.mxu0 0.0
    %848 = vmatpush2.xpose.msra.mxu0 0.0
    %849 = vmatprep.subr.mxu0 0.0
    %850 = vmatpush2.xpose.msra.mxu0 0.0
    %851 = vmatprep.subr.mxu0 0.0
    %852 = vmatpush2.xpose.msra.mxu0 0.0
    %853 = vmatprep.subr.mxu0 0.0
    %854 = vmatpush2.xpose.msra.mxu0 0.0
    %855 = vmatprep.subr.mxu0 0.0
    %856 = vmatpush2.xpose.msra.mxu0 0.0
    %857 = vmatprep.subr.mxu0 0.0
    %858 = vmatpush2.xpose.msra.mxu0 0.0
    %859 = vmatprep.subr.mxu0 0.0
    %860 = vmatpush2.xpose.msra.mxu0 0.0
    %861 = vmatprep.subr.mxu0 0.0
    %862 = vmatpush2.xpose.msra.mxu0 0.0
    %863 = vmatprep.subr.mxu0 0.0
    %864 = vmatpush2.xpose.msra.mxu0 0.0
    %865 = vmatprep.subr.mxu0 0.0
    %866 = vmatpush2.xpose.msra.mxu0 0.0
    %867 = vmatprep.mubr.f32.mxu0 0.0
    %868 = vmatmul.mubr.f32.gmra.mxu0 %v795
    %v869 = vpop.f32.mrf.mxu0
    %v870 = vadd.f32 %v86, %v869
    %v871 = vpop.f32.mrf.mxu0
    %872 = vmatprep.mubr.f32.mxu0 0.0
    %873 = vmatmul.mubr.f32.gmra.mxu0 %v797
    %v874 = vpop.f32.mrf.mxu0
    %v875 = vadd.f32 %v87, %v874
    %v876 = vpop.f32.mrf.mxu0
    %877 = vdwg.mxu0
    %v878 = vsel %vm303, %v870, -inf
    %879 = vmax.xlane.f32.xlu0 %v878
    %v880 = vpop.xlane.xlu0 %879
    %v881 = vsel %vm303, %v875, -inf
    %882 = vmax.xlane.f32.xlu0 %v881
    %v883 = vpop.xlane.xlu0 %882
    %v884 = vsub.f32 %v870, %v880
    %v885 = vsub.f32 %v875, %v883
    %v886 = vmul.f32 %v884, 1.442695
    %v887 = vpow.pop %v886
    %v888 = vmul.f32 %v885, 1.442695
    %v889 = vpow.pop %v888
    %v890 = vsel %vm303, %v887, 0.0
    %891 = vadd.xlane.f32.xlu0 %v890
    %v892 = vpop.xlane.xlu0 %891
    %v893 = vsel %vm303, %v889, 0.0
    %894 = vadd.xlane.f32.xlu0 %v893
    %v895 = vpop.xlane.xlu0 %894
    %v896 = vrcp.pop %v892
    %v897 = vrcp.pop %v895
    %v898 = vmul.f32 %v892, %v896
    %v899 = vmul.f32 %v895, %v897
    %v900 = vsub.f32 2.0, %v898
    %v901 = vsub.f32 2.0, %v899
    %v902 = vmul.f32 %v896, %v900
    %v903 = vmul.f32 %v897, %v901
    %v904 = vmul.f32 %v887, %v902
    %v905 = vmul.f32 %v889, %v903
    %906 = vrot.lane.b32.xlu0 %v205, 48
    %v907 = vpop.permute.xlu0 %906
    %908 = vrot.lane.b32.xlu0 %v210, 48
    %v909 = vpop.permute.xlu0 %908
    %v913 = vsel %vm303, %v904, 0
    %v916 = vsel %vm303, %v905, 0
    %918 = vmatprep.subr.mxu0 0.0
    %919 = vmatpush1.msra.mxu0 0.0
    %920 = vmatprep.subr.mxu0 0.0
    %921 = vmatpush1.msra.mxu0 0.0
    %922 = vmatprep.subr.mxu0 0.0
    %923 = vmatpush1.msra.mxu0 0.0
    %924 = vmatprep.subr.mxu0 0.0
    %925 = vmatpush1.msra.mxu0 0.0
    %926 = vmatprep.subr.mxu0 0.0
    %927 = vmatpush1.msra.mxu0 0.0
    %928 = vmatprep.subr.mxu0 0.0
    %929 = vmatpush1.msra.mxu0 0.0
    %930 = vmatprep.subr.mxu0 0.0
    %931 = vmatpush1.msra.mxu0 0.0
    %932 = vmatprep.subr.mxu0 0.0
    %933 = vmatpush1.msra.mxu0 0.0
    %934 = vmatprep.subr.mxu0 0.0
    %935 = vmatpush1.msra.mxu0 0.0
    %936 = vmatprep.subr.mxu0 0.0
    %937 = vmatpush1.msra.mxu0 0.0
    %938 = vmatprep.subr.mxu0 0.0
    %939 = vmatpush1.msra.mxu0 0.0
    %940 = vmatprep.subr.mxu0 0.0
    %941 = vmatpush1.msra.mxu0 0.0
    %942 = vmatprep.subr.mxu0 0.0
    %943 = vmatpush1.msra.mxu0 0.0
    %944 = vmatprep.subr.mxu0 0.0
    %945 = vmatpush1.msra.mxu0 0.0
    %946 = vmatprep.subr.mxu0 0.0
    %947 = vmatpush1.msra.mxu0 %v909
    %948 = vmatprep.subr.mxu0 0.0
    %949 = vmatpush1.msra.mxu0 %v907
    %950 = vmatprep.subr.mxu0 0.0
    %951 = vmatpush2.msra.mxu0 0.0
    %952 = vmatprep.subr.mxu0 0.0
    %953 = vmatpush2.msra.mxu0 0.0
    %954 = vmatprep.subr.mxu0 0.0
    %955 = vmatpush2.msra.mxu0 0.0
    %956 = vmatprep.subr.mxu0 0.0
    %957 = vmatpush2.msra.mxu0 0.0
    %958 = vmatprep.subr.mxu0 0.0
    %959 = vmatpush2.msra.mxu0 0.0
    %960 = vmatprep.subr.mxu0 0.0
    %961 = vmatpush2.msra.mxu0 0.0
    %962 = vmatprep.subr.mxu0 0.0
    %963 = vmatpush2.msra.mxu0 0.0
    %964 = vmatprep.subr.mxu0 0.0
    %965 = vmatpush2.msra.mxu0 0.0
    %966 = vmatprep.subr.mxu0 0.0
    %967 = vmatpush2.msra.mxu0 0.0
    %968 = vmatprep.subr.mxu0 0.0
    %969 = vmatpush2.msra.mxu0 0.0
    %970 = vmatprep.subr.mxu0 0.0
    %971 = vmatpush2.msra.mxu0 0.0
    %972 = vmatprep.subr.mxu0 0.0
    %973 = vmatpush2.msra.mxu0 0.0
    %974 = vmatprep.subr.mxu0 0.0
    %975 = vmatpush2.msra.mxu0 0.0
    %976 = vmatprep.subr.mxu0 0.0
    %977 = vmatpush2.msra.mxu0 0.0
    %978 = vmatprep.subr.mxu0 0.0
    %979 = vmatpush2.msra.mxu0 0.0
    %980 = vmatprep.subr.mxu0 0.0
    %981 = vmatpush2.msra.mxu0 0.0
    %982 = vmatprep.mubr.f32.mxu0 0.0
    %983 = vmatmul.mubr.f32.gmra.mxu0 %v913
    %v984 = vpop.f32.mrf.mxu0
    %v985 = vadd.f32 0.0, %v984
    %v986 = vpop.f32.mrf.mxu0
    %987 = vmatprep.mubr.f32.mxu0 0.0
    %988 = vmatmul.mubr.f32.gmra.mxu0 %v916
    %v989 = vpop.f32.mrf.mxu0
    %v990 = vadd.f32 0.0, %v989
    %v991 = vpop.f32.mrf.mxu0
    %992 = vdwg.mxu0
    %v994 = vsel %vm219, %v985, 0
    %v997 = vsel %vm219, %v990, 0
    %999 = vmatprep.subr.mxu0 0.0
    %1000 = vmatpush1.msra.mxu0 0.0
    %1001 = vmatprep.subr.mxu0 0.0
    %1002 = vmatpush1.msra.mxu0 0.0
    %1003 = vmatprep.subr.mxu0 0.0
    %1004 = vmatpush1.msra.mxu0 0.0
    %1005 = vmatprep.subr.mxu0 0.0
    %1006 = vmatpush1.msra.mxu0 0.0
    %1007 = vmatprep.subr.mxu0 0.0
    %1008 = vmatpush1.msra.mxu0 0.0
    %1009 = vmatprep.subr.mxu0 0.0
    %1010 = vmatpush1.msra.mxu0 0.0
    %1011 = vmatprep.subr.mxu0 0.0
    %1012 = vmatpush1.msra.mxu0 0.0
    %1013 = vmatprep.subr.mxu0 0.0
    %1014 = vmatpush1.msra.mxu0 0.0
    %1015 = vmatprep.subr.mxu0 0.0
    %1016 = vmatpush1.msra.mxu0 0.0
    %1017 = vmatprep.subr.mxu0 0.0
    %1018 = vmatpush1.msra.mxu0 0.0
    %1019 = vmatprep.subr.mxu0 0.0
    %1020 = vmatpush1.msra.mxu0 0.0
    %1021 = vmatprep.subr.mxu0 0.0
    %1022 = vmatpush1.msra.mxu0 0.0
    %1023 = vmatprep.subr.mxu0 0.0
    %1024 = vmatpush1.msra.mxu0 0.0
    %1025 = vmatprep.subr.mxu0 0.0
    %1026 = vmatpush1.msra.mxu0 0.0
    %1027 = vmatprep.subr.mxu0 0.0
    %1028 = vmatpush1.msra.mxu0 0.0
    %1029 = vmatprep.subr.mxu0 0.0
    %1030 = vmatpush1.msra.mxu0 %v64
    %1031 = vmatprep.subr.mxu0 0.0
    %1032 = vmatpush2.msra.mxu0 0.0
    %1033 = vmatprep.subr.mxu0 0.0
    %1034 = vmatpush2.msra.mxu0 0.0
    %1035 = vmatprep.subr.mxu0 0.0
    %1036 = vmatpush2.msra.mxu0 0.0
    %1037 = vmatprep.subr.mxu0 0.0
    %1038 = vmatpush2.msra.mxu0 0.0
    %1039 = vmatprep.subr.mxu0 0.0
    %1040 = vmatpush2.msra.mxu0 0.0
    %1041 = vmatprep.subr.mxu0 0.0
    %1042 = vmatpush2.msra.mxu0 0.0
    %1043 = vmatprep.subr.mxu0 0.0
    %1044 = vmatpush2.msra.mxu0 0.0
    %1045 = vmatprep.subr.mxu0 0.0
    %1046 = vmatpush2.msra.mxu0 0.0
    %1047 = vmatprep.subr.mxu0 0.0
    %1048 = vmatpush2.msra.mxu0 0.0
    %1049 = vmatprep.subr.mxu0 0.0
    %1050 = vmatpush2.msra.mxu0 0.0
    %1051 = vmatprep.subr.mxu0 0.0
    %1052 = vmatpush2.msra.mxu0 0.0
    %1053 = vmatprep.subr.mxu0 0.0
    %1054 = vmatpush2.msra.mxu0 0.0
    %1055 = vmatprep.subr.mxu0 0.0
    %1056 = vmatpush2.msra.mxu0 0.0
    %1057 = vmatprep.subr.mxu0 0.0
    %1058 = vmatpush2.msra.mxu0 0.0
    %1059 = vmatprep.subr.mxu0 0.0
    %1060 = vmatpush2.msra.mxu0 0.0
    %1061 = vmatprep.subr.mxu0 0.0
    %1062 = vmatpush2.msra.mxu0 0.0
    %1063 = vmatprep.mubr.f32.mxu0 0.0
    %1064 = vmatmul.mubr.f32.gmra.mxu0 %v994
    %v1065 = vpop.f32.mrf.mxu0
    %v1066 = vadd.f32 0.0, %v1065
    %v1067 = vpop.f32.mrf.mxu0
    %1068 = vmatprep.mubr.f32.mxu0 0.0
    %1069 = vmatmul.mubr.f32.gmra.mxu0 %v997
    %v1070 = vpop.f32.mrf.mxu0
    %v1071 = vadd.f32 0.0, %v1070
    %v1072 = vpop.f32.mrf.mxu0
    %1073 = vdwg.mxu0
    %v1074 = vadd.f32 %v779, %v1066
    %v1075 = vadd.f32 %v784, %v1071
    %1076 = vrot.lane.b32.xlu0 %v205, 104
    %v1077 = vpop.permute.xlu0 %1076
    %1078 = vrot.lane.b32.xlu0 %v210, 104
    %v1079 = vpop.permute.xlu0 %1078
    %1080 = vrot.lane.b32.xlu0 %v205, 72
    %v1081 = vpop.permute.xlu0 %1080
    %1082 = vrot.lane.b32.xlu0 %v210, 72
    %v1083 = vpop.permute.xlu0 %1082
    %v1084 = vsel %vm219, %v1077, 0
    %v1086 = vsel %vm219, %v1079, 0
    %v1088 = vsel %vm219, %v1081, 0
    %v1090 = vsel %vm219, %v1083, 0
    %1092 = vmatprep.subr.mxu0 0.0
    %1093 = vmatpush1.xpose.msra.mxu0 0.0
    %1094 = vmatprep.subr.mxu0 0.0
    %1095 = vmatpush1.xpose.msra.mxu0 0.0
    %1096 = vmatprep.subr.mxu0 0.0
    %1097 = vmatpush1.xpose.msra.mxu0 0.0
    %1098 = vmatprep.subr.mxu0 0.0
    %1099 = vmatpush1.xpose.msra.mxu0 0.0
    %1100 = vmatprep.subr.mxu0 0.0
    %1101 = vmatpush1.xpose.msra.mxu0 0.0
    %1102 = vmatprep.subr.mxu0 0.0
    %1103 = vmatpush1.xpose.msra.mxu0 0.0
    %1104 = vmatprep.subr.mxu0 0.0
    %1105 = vmatpush1.xpose.msra.mxu0 0.0
    %1106 = vmatprep.subr.mxu0 0.0
    %1107 = vmatpush1.xpose.msra.mxu0 0.0
    %1108 = vmatprep.subr.mxu0 0.0
    %1109 = vmatpush1.xpose.msra.mxu0 0.0
    %1110 = vmatprep.subr.mxu0 0.0
    %1111 = vmatpush1.xpose.msra.mxu0 0.0
    %1112 = vmatprep.subr.mxu0 0.0
    %1113 = vmatpush1.xpose.msra.mxu0 0.0
    %1114 = vmatprep.subr.mxu0 0.0
    %1115 = vmatpush1.xpose.msra.mxu0 0.0
    %1116 = vmatprep.subr.mxu0 0.0
    %1117 = vmatpush1.xpose.msra.mxu0 0.0
    %1118 = vmatprep.subr.mxu0 0.0
    %1119 = vmatpush1.xpose.msra.mxu0 0.0
    %1120 = vmatprep.subr.mxu0 0.0
    %1121 = vmatpush1.xpose.msra.mxu0 %v1090
    %1122 = vmatprep.subr.mxu0 0.0
    %1123 = vmatpush1.xpose.msra.mxu0 %v1088
    %1124 = vmatprep.subr.mxu0 0.0
    %1125 = vmatpush2.xpose.msra.mxu0 0.0
    %1126 = vmatprep.subr.mxu0 0.0
    %1127 = vmatpush2.xpose.msra.mxu0 0.0
    %1128 = vmatprep.subr.mxu0 0.0
    %1129 = vmatpush2.xpose.msra.mxu0 0.0
    %1130 = vmatprep.subr.mxu0 0.0
    %1131 = vmatpush2.xpose.msra.mxu0 0.0
    %1132 = vmatprep.subr.mxu0 0.0
    %1133 = vmatpush2.xpose.msra.mxu0 0.0
    %1134 = vmatprep.subr.mxu0 0.0
    %1135 = vmatpush2.xpose.msra.mxu0 0.0
    %1136 = vmatprep.subr.mxu0 0.0
    %1137 = vmatpush2.xpose.msra.mxu0 0.0
    %1138 = vmatprep.subr.mxu0 0.0
    %1139 = vmatpush2.xpose.msra.mxu0 0.0
    %1140 = vmatprep.subr.mxu0 0.0
    %1141 = vmatpush2.xpose.msra.mxu0 0.0
    %1142 = vmatprep.subr.mxu0 0.0
    %1143 = vmatpush2.xpose.msra.mxu0 0.0
    %1144 = vmatprep.subr.mxu0 0.0
    %1145 = vmatpush2.xpose.msra.mxu0 0.0
    %1146 = vmatprep.subr.mxu0 0.0
    %1147 = vmatpush2.xpose.msra.mxu0 0.0
    %1148 = vmatprep.subr.mxu0 0.0
    %1149 = vmatpush2.xpose.msra.mxu0 0.0
    %1150 = vmatprep.subr.mxu0 0.0
    %1151 = vmatpush2.xpose.msra.mxu0 0.0
    %1152 = vmatprep.subr.mxu0 0.0
    %1153 = vmatpush2.xpose.msra.mxu0 0.0
    %1154 = vmatprep.subr.mxu0 0.0
    %1155 = vmatpush2.xpose.msra.mxu0 0.0
    %1156 = vmatprep.mubr.f32.mxu0 0.0
    %1157 = vmatmul.mubr.f32.gmra.mxu0 %v1084
    %v1158 = vpop.f32.mrf.mxu0
    %v1159 = vadd.f32 %v86, %v1158
    %v1160 = vpop.f32.mrf.mxu0
    %1161 = vmatprep.mubr.f32.mxu0 0.0
    %1162 = vmatmul.mubr.f32.gmra.mxu0 %v1086
    %v1163 = vpop.f32.mrf.mxu0
    %v1164 = vadd.f32 %v87, %v1163
    %v1165 = vpop.f32.mrf.mxu0
    %1166 = vdwg.mxu0
    %v1167 = vsel %vm303, %v1159, -inf
    %1168 = vmax.xlane.f32.xlu0 %v1167
    %v1169 = vpop.xlane.xlu0 %1168
    %v1170 = vsel %vm303, %v1164, -inf
    %1171 = vmax.xlane.f32.xlu0 %v1170
    %v1172 = vpop.xlane.xlu0 %1171
    %v1173 = vsub.f32 %v1159, %v1169
    %v1174 = vsub.f32 %v1164, %v1172
    %v1175 = vmul.f32 %v1173, 1.442695
    %v1176 = vpow.pop %v1175
    %v1177 = vmul.f32 %v1174, 1.442695
    %v1178 = vpow.pop %v1177
    %v1179 = vsel %vm303, %v1176, 0.0
    %1180 = vadd.xlane.f32.xlu0 %v1179
    %v1181 = vpop.xlane.xlu0 %1180
    %v1182 = vsel %vm303, %v1178, 0.0
    %1183 = vadd.xlane.f32.xlu0 %v1182
    %v1184 = vpop.xlane.xlu0 %1183
    %v1185 = vrcp.pop %v1181
    %v1186 = vrcp.pop %v1184
    %v1187 = vmul.f32 %v1181, %v1185
    %v1188 = vmul.f32 %v1184, %v1186
    %v1189 = vsub.f32 2.0, %v1187
    %v1190 = vsub.f32 2.0, %v1188
    %v1191 = vmul.f32 %v1185, %v1189
    %v1192 = vmul.f32 %v1186, %v1190
    %v1193 = vmul.f32 %v1176, %v1191
    %v1194 = vmul.f32 %v1178, %v1192
    %1195 = vrot.lane.b32.xlu0 %v205, 40
    %v1196 = vpop.permute.xlu0 %1195
    %1197 = vrot.lane.b32.xlu0 %v210, 40
    %v1198 = vpop.permute.xlu0 %1197
    %v1202 = vsel %vm303, %v1193, 0
    %v1205 = vsel %vm303, %v1194, 0
    %1207 = vmatprep.subr.mxu0 0.0
    %1208 = vmatpush1.msra.mxu0 0.0
    %1209 = vmatprep.subr.mxu0 0.0
    %1210 = vmatpush1.msra.mxu0 0.0
    %1211 = vmatprep.subr.mxu0 0.0
    %1212 = vmatpush1.msra.mxu0 0.0
    %1213 = vmatprep.subr.mxu0 0.0
    %1214 = vmatpush1.msra.mxu0 0.0
    %1215 = vmatprep.subr.mxu0 0.0
    %1216 = vmatpush1.msra.mxu0 0.0
    %1217 = vmatprep.subr.mxu0 0.0
    %1218 = vmatpush1.msra.mxu0 0.0
    %1219 = vmatprep.subr.mxu0 0.0
    %1220 = vmatpush1.msra.mxu0 0.0
    %1221 = vmatprep.subr.mxu0 0.0
    %1222 = vmatpush1.msra.mxu0 0.0
    %1223 = vmatprep.subr.mxu0 0.0
    %1224 = vmatpush1.msra.mxu0 0.0
    %1225 = vmatprep.subr.mxu0 0.0
    %1226 = vmatpush1.msra.mxu0 0.0
    %1227 = vmatprep.subr.mxu0 0.0
    %1228 = vmatpush1.msra.mxu0 0.0
    %1229 = vmatprep.subr.mxu0 0.0
    %1230 = vmatpush1.msra.mxu0 0.0
    %1231 = vmatprep.subr.mxu0 0.0
    %1232 = vmatpush1.msra.mxu0 0.0
    %1233 = vmatprep.subr.mxu0 0.0
    %1234 = vmatpush1.msra.mxu0 0.0
    %1235 = vmatprep.subr.mxu0 0.0
    %1236 = vmatpush1.msra.mxu0 %v1198
    %1237 = vmatprep.subr.mxu0 0.0
    %1238 = vmatpush1.msra.mxu0 %v1196
    %1239 = vmatprep.subr.mxu0 0.0
    %1240 = vmatpush2.msra.mxu0 0.0
    %1241 = vmatprep.subr.mxu0 0.0
    %1242 = vmatpush2.msra.mxu0 0.0
    %1243 = vmatprep.subr.mxu0 0.0
    %1244 = vmatpush2.msra.mxu0 0.0
    %1245 = vmatprep.subr.mxu0 0.0
    %1246 = vmatpush2.msra.mxu0 0.0
    %1247 = vmatprep.subr.mxu0 0.0
    %1248 = vmatpush2.msra.mxu0 0.0
    %1249 = vmatprep.subr.mxu0 0.0
    %1250 = vmatpush2.msra.mxu0 0.0
    %1251 = vmatprep.subr.mxu0 0.0
    %1252 = vmatpush2.msra.mxu0 0.0
    %1253 = vmatprep.subr.mxu0 0.0
    %1254 = vmatpush2.msra.mxu0 0.0
    %1255 = vmatprep.subr.mxu0 0.0
    %1256 = vmatpush2.msra.mxu0 0.0
    %1257 = vmatprep.subr.mxu0 0.0
    %1258 = vmatpush2.msra.mxu0 0.0
    %1259 = vmatprep.subr.mxu0 0.0
    %1260 = vmatpush2.msra.mxu0 0.0
    %1261 = vmatprep.subr.mxu0 0.0
    %1262 = vmatpush2.msra.mxu0 0.0
    %1263 = vmatprep.subr.mxu0 0.0
    %1264 = vmatpush2.msra.mxu0 0.0
    %1265 = vmatprep.subr.mxu0 0.0
    %1266 = vmatpush2.msra.mxu0 0.0
    %1267 = vmatprep.subr.mxu0 0.0
    %1268 = vmatpush2.msra.mxu0 0.0
    %1269 = vmatprep.subr.mxu0 0.0
    %1270 = vmatpush2.msra.mxu0 0.0
    %1271 = vmatprep.mubr.f32.mxu0 0.0
    %1272 = vmatmul.mubr.f32.gmra.mxu0 %v1202
    %v1273 = vpop.f32.mrf.mxu0
    %v1274 = vadd.f32 0.0, %v1273
    %v1275 = vpop.f32.mrf.mxu0
    %1276 = vmatprep.mubr.f32.mxu0 0.0
    %1277 = vmatmul.mubr.f32.gmra.mxu0 %v1205
    %v1278 = vpop.f32.mrf.mxu0
    %v1279 = vadd.f32 0.0, %v1278
    %v1280 = vpop.f32.mrf.mxu0
    %1281 = vdwg.mxu0
    %v1283 = vsel %vm219, %v1274, 0
    %v1286 = vsel %vm219, %v1279, 0
    %1288 = vmatprep.subr.mxu0 0.0
    %1289 = vmatpush1.msra.mxu0 0.0
    %1290 = vmatprep.subr.mxu0 0.0
    %1291 = vmatpush1.msra.mxu0 0.0
    %1292 = vmatprep.subr.mxu0 0.0
    %1293 = vmatpush1.msra.mxu0 0.0
    %1294 = vmatprep.subr.mxu0 0.0
    %1295 = vmatpush1.msra.mxu0 0.0
    %1296 = vmatprep.subr.mxu0 0.0
    %1297 = vmatpush1.msra.mxu0 0.0
    %1298 = vmatprep.subr.mxu0 0.0
    %1299 = vmatpush1.msra.mxu0 0.0
    %1300 = vmatprep.subr.mxu0 0.0
    %1301 = vmatpush1.msra.mxu0 0.0
    %1302 = vmatprep.subr.mxu0 0.0
    %1303 = vmatpush1.msra.mxu0 0.0
    %1304 = vmatprep.subr.mxu0 0.0
    %1305 = vmatpush1.msra.mxu0 0.0
    %1306 = vmatprep.subr.mxu0 0.0
    %1307 = vmatpush1.msra.mxu0 0.0
    %1308 = vmatprep.subr.mxu0 0.0
    %1309 = vmatpush1.msra.mxu0 0.0
    %1310 = vmatprep.subr.mxu0 0.0
    %1311 = vmatpush1.msra.mxu0 0.0
    %1312 = vmatprep.subr.mxu0 0.0
    %1313 = vmatpush1.msra.mxu0 0.0
    %1314 = vmatprep.subr.mxu0 0.0
    %1315 = vmatpush1.msra.mxu0 0.0
    %1316 = vmatprep.subr.mxu0 0.0
    %1317 = vmatpush1.msra.mxu0 0.0
    %1318 = vmatprep.subr.mxu0 0.0
    %1319 = vmatpush1.msra.mxu0 %v65
    %1320 = vmatprep.subr.mxu0 0.0
    %1321 = vmatpush2.msra.mxu0 0.0
    %1322 = vmatprep.subr.mxu0 0.0
    %1323 = vmatpush2.msra.mxu0 0.0
    %1324 = vmatprep.subr.mxu0 0.0
    %1325 = vmatpush2.msra.mxu0 0.0
    %1326 = vmatprep.subr.mxu0 0.0
    %1327 = vmatpush2.msra.mxu0 0.0
    %1328 = vmatprep.subr.mxu0 0.0
    %1329 = vmatpush2.msra.mxu0 0.0
    %1330 = vmatprep.subr.mxu0 0.0
    %1331 = vmatpush2.msra.mxu0 0.0
    %1332 = vmatprep.subr.mxu0 0.0
    %1333 = vmatpush2.msra.mxu0 0.0
    %1334 = vmatprep.subr.mxu0 0.0
    %1335 = vmatpush2.msra.mxu0 0.0
    %1336 = vmatprep.subr.mxu0 0.0
    %1337 = vmatpush2.msra.mxu0 0.0
    %1338 = vmatprep.subr.mxu0 0.0
    %1339 = vmatpush2.msra.mxu0 0.0
    %1340 = vmatprep.subr.mxu0 0.0
    %1341 = vmatpush2.msra.mxu0 0.0
    %1342 = vmatprep.subr.mxu0 0.0
    %1343 = vmatpush2.msra.mxu0 0.0
    %1344 = vmatprep.subr.mxu0 0.0
    %1345 = vmatpush2.msra.mxu0 0.0
    %1346 = vmatprep.subr.mxu0 0.0
    %1347 = vmatpush2.msra.mxu0 0.0
    %1348 = vmatprep.subr.mxu0 0.0
    %1349 = vmatpush2.msra.mxu0 0.0
    %1350 = vmatprep.subr.mxu0 0.0
    %1351 = vmatpush2.msra.mxu0 0.0
    %1352 = vmatprep.mubr.f32.mxu0 0.0
    %1353 = vmatmul.mubr.f32.gmra.mxu0 %v1283
    %v1354 = vpop.f32.mrf.mxu0
    %v1355 = vadd.f32 0.0, %v1354
    %v1356 = vpop.f32.mrf.mxu0
    %1357 = vmatprep.mubr.f32.mxu0 0.0
    %1358 = vmatmul.mubr.f32.gmra.mxu0 %v1286
    %v1359 = vpop.f32.mrf.mxu0
    %v1360 = vadd.f32 0.0, %v1359
    %v1361 = vpop.f32.mrf.mxu0
    %1362 = vdwg.mxu0
    %v1363 = vadd.f32 %v1074, %v1355
    %v1364 = vadd.f32 %v1075, %v1360
    %v1365 = vadd.f32 %v56, %v1363
    %v1366 = vadd.f32 %v57, %v1364
    %v1367 = vlaneseq
    %v1368 = vshrl.u32 %v1367, 7
    %v1369 = vsub.s32 0, %v1368
    %v1370 = vrot.slane %v79, %v1369
    %v1371 = vadd.f32 %v1365, %v1370
    %v1372 = vadd.f32 %v1366, %v1370
    %v1373 = vsel %vm88, %v1371, 0.0
    %1374 = vadd.xlane.f32.xlu0 %v1373
    %v1375 = vpop.xlane.xlu0 %1374
    %v1376 = vsel %vm88, %v1372, 0.0
    %1377 = vadd.xlane.f32.xlu0 %v1376
    %v1378 = vpop.xlane.xlu0 %1377
    %v1379 = vmul.f32 %v1375, %v95
    %v1380 = vmul.f32 %v1378, %v95
    %v1381 = vsub.f32 %v1371, %v1379
    %v1382 = vsub.f32 %v1372, %v1380
    %v1383 = vmul.f32 %v1381, %v1381
    %v1384 = vmul.f32 %v1382, %v1382
    %v1385 = vsel %vm88, %v1383, 0.0
    %1386 = vadd.xlane.f32.xlu0 %v1385
    %v1387 = vpop.xlane.xlu0 %1386
    %v1388 = vsel %vm88, %v1384, 0.0
    %1389 = vadd.xlane.f32.xlu0 %v1388
    %v1390 = vpop.xlane.xlu0 %1389
    %v1391 = vmul.f32 %v1387, %v95
    %v1392 = vmul.f32 %v1390, %v95
    %v1393 = vadd.f32 %v1391, 1e-05
    %v1394 = vadd.f32 %v1392, 1e-05
    %v1395 = vrsqrt.pop %v1393
    %v1396 = vrsqrt.pop %v1394
    %v1397 = vmul.f32 %v1381, %v1395
    %v1398 = vmul.f32 %v1382, %v1396
    %v1399 = vlaneseq
    %v1400 = vshrl.u32 %v1399, 7
    %v1401 = vsub.s32 0, %v1400
    %v1402 = vrot.slane %v84, %v1401
    %v1403 = vmul.f32 %v1397, %v1402
    %v1404 = vmul.f32 %v1398, %v1402
    %v1405 = vlaneseq
    %v1406 = vshrl.u32 %v1405, 7
    %v1407 = vsub.s32 0, %v1406
    %v1408 = vrot.slane %v85, %v1407
    %v1409 = vadd.f32 %v1403, %v1408
    %v1410 = vadd.f32 %v1404, %v1408
    %v1411 = vlaneseq
    %v1412 = vshrl.u32 %v1411, 7
    %v1413 = vsub.s32 0, %v1412
    %v1414 = vrot.slane %v80, %v1413
    %v1416 = vsel %vm88, %v1409, 0
    %v1419 = vsel %vm88, %v1410, 0
    %1421 = vmatprep.subr.mxu0 0.0
    %1422 = vmatpush1.msra.mxu0 0.0
    %1423 = vmatprep.subr.mxu0 0.0
    %1424 = vmatpush1.msra.mxu0 0.0
    %1425 = vmatprep.subr.mxu0 0.0
    %1426 = vmatpush1.msra.mxu0 0.0
    %1427 = vmatprep.subr.mxu0 0.0
    %1428 = vmatpush1.msra.mxu0 0.0
    %1429 = vmatprep.subr.mxu0 0.0
    %1430 = vmatpush1.msra.mxu0 0.0
    %1431 = vmatprep.subr.mxu0 0.0
    %1432 = vmatpush1.msra.mxu0 0.0
    %1433 = vmatprep.subr.mxu0 0.0
    %1434 = vmatpush1.msra.mxu0 0.0
    %1435 = vmatprep.subr.mxu0 0.0
    %1436 = vmatpush1.msra.mxu0 0.0
    %1437 = vmatprep.subr.mxu0 0.0
    %1438 = vmatpush1.msra.mxu0 0.0
    %1439 = vmatprep.subr.mxu0 0.0
    %1440 = vmatpush1.msra.mxu0 0.0
    %1441 = vmatprep.subr.mxu0 0.0
    %1442 = vmatpush1.msra.mxu0 0.0
    %1443 = vmatprep.subr.mxu0 0.0
    %1444 = vmatpush1.msra.mxu0 0.0
    %1445 = vmatprep.subr.mxu0 0.0
    %1446 = vmatpush1.msra.mxu0 %v69
    %1447 = vmatprep.subr.mxu0 0.0
    %1448 = vmatpush1.msra.mxu0 %v68
    %1449 = vmatprep.subr.mxu0 0.0
    %1450 = vmatpush1.msra.mxu0 %v67
    %1451 = vmatprep.subr.mxu0 0.0
    %1452 = vmatpush1.msra.mxu0 %v66
    %1453 = vmatprep.subr.mxu0 0.0
    %1454 = vmatpush2.msra.mxu0 0.0
    %1455 = vmatprep.subr.mxu0 0.0
    %1456 = vmatpush2.msra.mxu0 0.0
    %1457 = vmatprep.subr.mxu0 0.0
    %1458 = vmatpush2.msra.mxu0 0.0
    %1459 = vmatprep.subr.mxu0 0.0
    %1460 = vmatpush2.msra.mxu0 0.0
    %1461 = vmatprep.subr.mxu0 0.0
    %1462 = vmatpush2.msra.mxu0 0.0
    %1463 = vmatprep.subr.mxu0 0.0
    %1464 = vmatpush2.msra.mxu0 0.0
    %1465 = vmatprep.subr.mxu0 0.0
    %1466 = vmatpush2.msra.mxu0 0.0
    %1467 = vmatprep.subr.mxu0 0.0
    %1468 = vmatpush2.msra.mxu0 0.0
    %1469 = vmatprep.subr.mxu0 0.0
    %1470 = vmatpush2.msra.mxu0 0.0
    %1471 = vmatprep.subr.mxu0 0.0
    %1472 = vmatpush2.msra.mxu0 0.0
    %1473 = vmatprep.subr.mxu0 0.0
    %1474 = vmatpush2.msra.mxu0 0.0
    %1475 = vmatprep.subr.mxu0 0.0
    %1476 = vmatpush2.msra.mxu0 0.0
    %1477 = vmatprep.subr.mxu0 0.0
    %1478 = vmatpush2.msra.mxu0 0.0
    %1479 = vmatprep.subr.mxu0 0.0
    %1480 = vmatpush2.msra.mxu0 0.0
    %1481 = vmatprep.subr.mxu0 0.0
    %1482 = vmatpush2.msra.mxu0 0.0
    %1483 = vmatprep.subr.mxu0 0.0
    %1484 = vmatpush2.msra.mxu0 0.0
    %1485 = vmatprep.mubr.f32.mxu0 0.0
    %1486 = vmatmul.mubr.f32.gmra.mxu0 %v1416
    %v1487 = vpop.f32.mrf.mxu0
    %v1488 = vadd.f32 %v1414, %v1487
    %v1489 = vpop.f32.mrf.mxu0
    %1490 = vmatprep.mubr.f32.mxu0 0.0
    %1491 = vmatmul.mubr.f32.gmra.mxu0 %v1419
    %v1492 = vpop.f32.mrf.mxu0
    %v1493 = vadd.f32 %v1414, %v1492
    %v1494 = vpop.f32.mrf.mxu0
    %1495 = vdwg.mxu0
    %v1496 = vmax.f32 %v1488, 0.0
    %v1497 = vmax.f32 %v1493, 0.0
    %v1498 = vlaneseq
    %v1499 = vshrl.u32 %v1498, 7
    %v1500 = vsub.s32 0, %v1499
    %v1501 = vrot.slane %v81, %v1500
    %vm1502 = vcmask 523264
    %v1504 = vsel %vm1502, %v1496, 0
    %v1507 = vsel %vm1502, %v1497, 0
    %1509 = vmatprep.subr.mxu0 0.0
    %1510 = vmatpush1.msra.mxu0 0.0
    %1511 = vmatprep.subr.mxu0 0.0
    %1512 = vmatpush1.msra.mxu0 0.0
    %1513 = vmatprep.subr.mxu0 0.0
    %1514 = vmatpush1.msra.mxu0 0.0
    %1515 = vmatprep.subr.mxu0 0.0
    %1516 = vmatpush1.msra.mxu0 0.0
    %1517 = vmatprep.subr.mxu0 0.0
    %1518 = vmatpush1.msra.mxu0 0.0
    %1519 = vmatprep.subr.mxu0 0.0
    %1520 = vmatpush1.msra.mxu0 0.0
    %1521 = vmatprep.subr.mxu0 0.0
    %1522 = vmatpush1.msra.mxu0 0.0
    %1523 = vmatprep.subr.mxu0 0.0
    %1524 = vmatpush1.msra.mxu0 0.0
    %1525 = vmatprep.subr.mxu0 0.0
    %1526 = vmatpush1.msra.mxu0 %v77
    %1527 = vmatprep.subr.mxu0 0.0
    %1528 = vmatpush1.msra.mxu0 %v76
    %1529 = vmatprep.subr.mxu0 0.0
    %1530 = vmatpush1.msra.mxu0 %v75
    %1531 = vmatprep.subr.mxu0 0.0
    %1532 = vmatpush1.msra.mxu0 %v74
    %1533 = vmatprep.subr.mxu0 0.0
    %1534 = vmatpush1.msra.mxu0 %v73
    %1535 = vmatprep.subr.mxu0 0.0
    %1536 = vmatpush1.msra.mxu0 %v72
    %1537 = vmatprep.subr.mxu0 0.0
    %1538 = vmatpush1.msra.mxu0 %v71
    %1539 = vmatprep.subr.mxu0 0.0
    %1540 = vmatpush1.msra.mxu0 %v70
    %1541 = vmatprep.subr.mxu0 0.0
    %1542 = vmatpush2.msra.mxu0 0.0
    %1543 = vmatprep.subr.mxu0 0.0
    %1544 = vmatpush2.msra.mxu0 0.0
    %1545 = vmatprep.subr.mxu0 0.0
    %1546 = vmatpush2.msra.mxu0 0.0
    %1547 = vmatprep.subr.mxu0 0.0
    %1548 = vmatpush2.msra.mxu0 0.0
    %1549 = vmatprep.subr.mxu0 0.0
    %1550 = vmatpush2.msra.mxu0 0.0
    %1551 = vmatprep.subr.mxu0 0.0
    %1552 = vmatpush2.msra.mxu0 0.0
    %1553 = vmatprep.subr.mxu0 0.0
    %1554 = vmatpush2.msra.mxu0 0.0
    %1555 = vmatprep.subr.mxu0 0.0
    %1556 = vmatpush2.msra.mxu0 0.0
    %1557 = vmatprep.subr.mxu0 0.0
    %1558 = vmatpush2.msra.mxu0 0.0
    %1559 = vmatprep.subr.mxu0 0.0
    %1560 = vmatpush2.msra.mxu0 0.0
    %1561 = vmatprep.subr.mxu0 0.0
    %1562 = vmatpush2.msra.mxu0 0.0
    %1563 = vmatprep.subr.mxu0 0.0
    %1564 = vmatpush2.msra.mxu0 0.0
    %1565 = vmatprep.subr.mxu0 0.0
    %1566 = vmatpush2.msra.mxu0 0.0
    %1567 = vmatprep.subr.mxu0 0.0
    %1568 = vmatpush2.msra.mxu0 0.0
    %1569 = vmatprep.subr.mxu0 0.0
    %1570 = vmatpush2.msra.mxu0 0.0
    %1571 = vmatprep.subr.mxu0 0.0
    %1572 = vmatpush2.msra.mxu0 0.0
    %1573 = vmatprep.mubr.f32.mxu0 0.0
    %1574 = vmatmul.mubr.f32.gmra.mxu0 %v1504
    %v1575 = vpop.f32.mrf.mxu0
    %v1576 = vadd.f32 %v1501, %v1575
    %v1577 = vpop.f32.mrf.mxu0
    %1578 = vmatprep.mubr.f32.mxu0 0.0
    %1579 = vmatmul.mubr.f32.gmra.mxu0 %v1507
    %v1580 = vpop.f32.mrf.mxu0
    %v1581 = vadd.f32 %v1501, %v1580
    %v1582 = vpop.f32.mrf.mxu0
    %1583 = vdwg.mxu0
    %v1584 = vadd.f32 %v1371, %v1576
    %v1585 = vadd.f32 %v1372, %v1581
    %1586 = vst.msk [vmem:[#allocation8] sm:$0xff] %vm88, %v1584
    %1587 = vst.msk [vmem:[#allocation8 + $0x8] sm:$0xff] %vm88, %v1585
    // Predicated region
    $region26: #{fwd.1} parent=1 // pred_check
      _
    $region27: #{fwd.1} parent=1 // pred_check_branch
      %1589 = sbr.rel (0) target = $region29
    $region28: #{fwd.1} parent=1 // pred_region
      %s1591 = ssub.s32 256, 256
      %1592 = vsyncadd [#allocation4], %s1591
      %s1593 = sshll.u32 [#allocation8], 4
      %s1594 = int_to_ptr.vmem [resolvable:$true] %s1593
      %1599 = dma.vmem_to_hbm [thread:$0]  %s1594, 256, %s3, [#allocation4], 128, 128, 8
    $region29: #{fwd.1} parent=1 // pred_fallthru
      _
    // Predicated region
    $region30: #{fwd.1} parent=1 // pred_check
      _
    $region31: #{fwd.1} parent=1 // pred_check_branch
      %1601 = sbr.rel (0) target = $region33
    $region32: #{fwd.1} parent=1 // pred_region
      %1602 = dma.done [#allocation4], 256
    $region33: #{fwd.1} parent=1 // pred_fallthru
      _
    %1603 = vsyncpa [#allocation3], 1
    %1604 = vsyncpa [#allocation6], 1
    %1605 = vsyncpa [#allocation4], 1

</llo_original>
